<compile_context>
chip_gen: v7x
topology: tpu7x:2x2x1
jax: 0.10.0
libtpu: 0.0.40
codegen_flags: <defaults>
</compile_context>

<pallas_src>
import numpy as np

import jax
import jax.numpy as jnp
from jax.experimental import pallas as pl
from jax.experimental.pallas import tpu as pltpu


# ---------------------------------------------------------------------------
# Host-side packing: BN folding, stacked im2col weights, pooling matrices, slab
# ---------------------------------------------------------------------------
def _fold_bn_np(gamma, beta, mean, var, bias, eps=1e-5):
    g = np.asarray(gamma, np.float32)
    b = np.asarray(beta, np.float32)
    m = np.asarray(mean, np.float32)
    v = np.asarray(var, np.float32)
    bi = np.asarray(bias, np.float32)
    s = g / np.sqrt(v + eps)
    return s, b - m * s + bi * s


def _build_pool_matrix(L, k, stride):
    """(L, Lout) matrix A with x @ A == MyAvgPool1dPadSame(k, stride)(x) along the last axis."""
    Lout = (L + stride - 1) // stride
    p = max(0, (Lout - 1) * stride + k - L)
    pad_l = p // 2
    pad_r = p - pad_l
    if pad_l >= L or pad_r >= L:
        raise ValueError(
            f"reflect SAME padding ({pad_l},{pad_r}) must be narrower than input length {L}")
    Lp = L + p
    orig = np.empty(Lp, dtype=np.int64)
    for q in range(Lp):
        if q < pad_l:                      # left reflect: [x[pad_l], ..., x[1]]
            orig[q] = pad_l - q
        elif q < pad_l + L:                # body
            orig[q] = q - pad_l
        else:                              # right reflect: [x[L-2], x[L-3], ...]
            orig[q] = L - 2 - (q - (pad_l + L))
    A = np.zeros((L, Lout), dtype=np.float32)
    for m in range(Lout):
        for t in range(k):
            A[orig[m * stride + t], m] += 1.0 / k
    return A


def _pack_param_slab(params, tp, Ls, Lcs, Bt, gap):
    """Pack every parameter into one (rows, width) f32 slab; return (slab, name->(row0,nr,nc))."""
    kernels = [tp['kernels'][n] for n in ('k1', 'k2', 'k3')]
    n_branch = len(kernels)
    Cn = tp['channel_n']
    Cin0 = tp['data_dimensions'][0]
    stride = tp['stride']
    n_block = tp['n_block']
    kmax = max(kernels)

    entries = []
    in_ch = Cin0
    for i, blk in enumerate(params['blocks']):
        # conv1 stacked across branches; conv2 block-diagonal across branches
        W1 = np.zeros((n_branch * Cn, kmax * in_ch), np.float32)
        W2 = np.zeros((n_branch * Cn, kmax * n_branch * Cn), np.float32)
        AFF = np.zeros((n_branch * Cn, 4), np.float32)
        for b, (k, br) in enumerate(zip(kernels, blk['branches'])):
            off = (kmax // 2) - (k // 2)            # align torch tap t' -> stacked tap t'+off
            w1 = np.asarray(br['w1'], np.float32)   # (Cn, in_ch, k)
            w2 = np.asarray(br['w2'], np.float32)   # (Cn, Cn, k)
            for t_ in range(k):
                t = t_ + off
                W1[b * Cn:(b + 1) * Cn, t * in_ch:(t + 1) * in_ch] = w1[:, :, t_]
                c0 = t * n_branch * Cn + b * Cn
                W2[b * Cn:(b + 1) * Cn, c0:c0 + Cn] = w2[:, :, t_]
            sc1, sh1 = _fold_bn_np(br['g1'], br['be1'], br['m1'], br['v1'], br['b1'])
            sc2, sh2 = _fold_bn_np(br['g2'], br['be2'], br['m2'], br['v2'], br['b2'])
            AFF[b * Cn:(b + 1) * Cn, 0] = sc1
            AFF[b * Cn:(b + 1) * Cn, 1] = sh1
            AFF[b * Cn:(b + 1) * Cn, 2] = sc2
            AFF[b * Cn:(b + 1) * Cn, 3] = sh2
        entries += [(f"b{i}_w1", W1), (f"b{i}_w2", W2), (f"b{i}_aff", AFF)]

        # per-branch reflect-SAME avg-pool, block-diagonal over the packed samples
        for b, k in enumerate(kernels):
            A = _build_pool_matrix(Ls[i], k, stride)
            Ap = np.zeros((Lcs[i], Lcs[i + 1]), np.float32)
            for s in range(Bt):
                r0 = s * (Ls[i] + gap)
                c0 = s * (Ls[i + 1] + gap)
                Ap[r0:r0 + Ls[i], c0:c0 + Ls[i + 1]] = A
            entries.append((f"b{i}_pool{b}", Ap))

        entries += [
            (f"b{i}_wp", np.asarray(blk['wp'], np.float32)),
            (f"b{i}_bp", np.asarray(blk['bp'], np.float32).reshape(Cn, 1)),
        ]
        in_ch = Cn

    # gap masks (1 on sample lanes, 0 on gap lanes) for each level that feeds a conv
    for i in range(n_block):
        m = np.zeros((1, Lcs[i]), np.float32)
        for s in range(Bt):
            r0 = s * (Ls[i] + gap)
            m[0, r0:r0 + Ls[i]] = 1.0
        entries.append((f"mask{i}", m))

    entries += [
        ("wf", np.asarray(params['w_final'], np.float32)),
        ("bf", np.asarray(params['b_final'], np.float32).reshape(1, 1)),
    ]

    width = max(a.shape[1] for _, a in entries)
    width = ((width + 127) // 128) * 128            # lane-pad the slab to a multiple of 128
    layout = {}
    rows = []
    r = 0
    for name, a in entries:
        nr, nc = a.shape
        row = np.zeros((nr, width), np.float32)
        row[:, :nc] = a
        rows.append(row)
        layout[name] = (r, nr, nc)
        r += nr
    slab = np.concatenate(rows, axis=0)
    if slab.shape[0] % 8:                           # sublane-pad for a tidy single DMA
        slab = np.concatenate(
            [slab, np.zeros((8 - slab.shape[0] % 8, width), np.float32)], axis=0)
    return jnp.asarray(slab), layout


# ---------------------------------------------------------------------------
# Fused forward kernel: one grid step = Bt lane-packed samples, everything 2D (C x Lc)
# ---------------------------------------------------------------------------
def _make_fused_kernel(layout, n_block, n_branch, Cn, kmax, Bt, gap, L_last):
    pad = kmax // 2

    def view(ref, name):
        r0, nr, nc = layout[name]
        return ref[pl.ds(r0, nr), pl.ds(0, nc)]

    def im2col(h):
        # kmax-tap im2col shared by all three branches (smaller kernels use zero weight taps)
        c, L = h.shape
        z = jnp.zeros((c, pad), jnp.float32)
        hp = jnp.concatenate([z, h, z], axis=1)
        return jnp.concatenate([hp[:, t:t + L] for t in range(kmax)], axis=0)  # (kmax*c, L)

    def kernel(x_ref, slab_ref, o_ref):
        h = x_ref[0]                                          # (Cin, Lc0) lane-packed samples
        for i in range(n_block):
            aff = view(slab_ref, f"b{i}_aff")                 # (3Cn, 4) folded BN affines
            # conv1: ONE stacked matmul over all 3 branches + BN + ReLU, then re-zero gaps
            g = jnp.dot(view(slab_ref, f"b{i}_w1"), im2col(h),
                        preferred_element_type=jnp.float32)
            g = jnp.maximum(g * aff[:, 0:1] + aff[:, 1:2], 0.0)
            g = g * view(slab_ref, f"mask{i}")
            # conv2: ONE block-diagonal matmul + BN + ReLU (gap garbage filtered by pooling)
            g = jnp.dot(view(slab_ref, f"b{i}_w2"), im2col(g),
                        preferred_element_type=jnp.float32)
            g = jnp.maximum(g * aff[:, 2:3] + aff[:, 3:4], 0.0)
            # reflect-SAME avg-pool per branch as one dense matmul (also re-packs the layout)
            pooled = [
                jnp.dot(g[b * Cn:(b + 1) * Cn, :], view(slab_ref, f"b{i}_pool{b}"),
                        preferred_element_type=jnp.float32)
                for b in range(n_branch)
            ]
            cat = jnp.concatenate(pooled, axis=0)             # (3Cn, Lc_{i+1})
            h = jnp.dot(view(slab_ref, f"b{i}_wp"), cat,
                        preferred_element_type=jnp.float32) + view(slab_ref, f"b{i}_bp")
            if i + 1 < n_block:                               # keep gaps zero for next conv
                h = h * view(slab_ref, f"mask{i + 1}")
        y = jnp.dot(view(slab_ref, "wf"), h,
                    preferred_element_type=jnp.float32) + view(slab_ref, "bf")  # (1, Lc_last)
        # drop the inter-sample gaps -> lane-dense (1, Bt*L_last) output store
        step = L_last + gap
        o_ref[0] = jnp.concatenate(
            [y[:, s * step:s * step + L_last] for s in range(Bt)], axis=1)

    return kernel


def feature_extractor_forward(params, x, tp):
    x = x.astype(jnp.float32)
    B, Cin0, L0 = x.shape
    kernels = [tp['kernels'][n] for n in ('k1', 'k2', 'k3')]
    assert all(k % 2 == 1 for k in kernels), "odd conv kernels expected (SAME-length conv)"
    n_block = tp['n_block']
    stride = tp['stride']
    Cn = tp['channel_n']
    kmax = max(kernels)
    gap = kmax // 2

    # Batch tiling: pack up to 8 samples along lanes per step, but keep >= 2 grid steps
    # whenever B >= 2 so both v7x TensorCores get work (v5e/v6e: extra step is ~0.35 us).
    Bt = 1 if B < 2 else min(8, (B + 1) // 2)
    n_steps = -(-B // Bt)
    Bp = n_steps * Bt

    # per-level per-sample lengths and packed (lane) lengths
    Ls = [L0]
    for _ in range(n_block):
        Ls.append((Ls[-1] + stride - 1) // stride)
    Lcs = [Bt * (L + gap) for L in Ls]
    L_last = Ls[-1]

    slab, layout = _pack_param_slab(params, tp, Ls, Lcs, Bt, gap)

    # pack Bt samples per grid step along lanes: [s0, gap zeros, s1, gap, ..., gap]
    xp = x if Bp == B else jnp.concatenate(
        [x, jnp.zeros((Bp - B, Cin0, L0), jnp.float32)], axis=0)
    xp = jnp.pad(xp.reshape(n_steps, Bt, Cin0, L0), ((0, 0), (0, 0), (0, 0), (0, gap)))
    xp = xp.transpose(0, 2, 1, 3).reshape(n_steps, Cin0, Lcs[0])

    kernel = _make_fused_kernel(layout, n_block, len(kernels), Cn, kmax, Bt, gap, L_last)

    out = pl.pallas_call(
        kernel,
        out_shape=jax.ShapeDtypeStruct((n_steps, 1, Bt * L_last), jnp.float32),
        grid=(n_steps,),
        in_specs=[
            pl.BlockSpec((1, Cin0, Lcs[0]), lambda b: (b, 0, 0)),
            pl.BlockSpec(slab.shape, lambda b: (0, 0)),   # single packed parameter slab
        ],
        out_specs=pl.BlockSpec((1, 1, Bt * L_last), lambda b: (b, 0, 0)),
        compiler_params=pltpu.CompilerParams(dimension_semantics=("parallel",)),
    )(xp, slab)

    return out.reshape(Bp, 1, L_last)[:B]


# ---------------------------------------------------------------------------
# Deterministic parameter initialization (synthetic; no checkpoint loading)
# ---------------------------------------------------------------------------
def init_params(base_key, tp):
    Cin0 = tp['data_dimensions'][0]
    Cn = tp['channel_n']
    kernels = [tp['kernels'][n] for n in ('k1', 'k2', 'k3')]
    n_block = tp['n_block']

    counter = [0]

    def nk():
        counter[0] += 1
        return jax.random.fold_in(base_key, counter[0])

    def conv_w(cout, cin, k):
        return 0.1 * jax.random.normal(nk(), (cout, cin, k), jnp.float32)

    def vec_n(c, s=0.05):
        return s * jax.random.normal(nk(), (c,), jnp.float32)

    def bn(c):
        return dict(
            g=jax.random.uniform(nk(), (c,), jnp.float32, 0.8, 1.2),
            be=vec_n(c),
            m=vec_n(c),
            v=jax.random.uniform(nk(), (c,), jnp.float32, 0.5, 1.5),
        )

    blocks = []
    in_ch = Cin0
    for _ in range(n_block):
        branches = []
        for k in kernels:
            bn1 = bn(Cn)
            bn2 = bn(Cn)
            branches.append(dict(
                w1=conv_w(Cn, in_ch, k), b1=vec_n(Cn),
                g1=bn1['g'], be1=bn1['be'], m1=bn1['m'], v1=bn1['v'],
                w2=conv_w(Cn, Cn, k), b2=vec_n(Cn),
                g2=bn2['g'], be2=bn2['be'], m2=bn2['m'], v2=bn2['v'],
            ))
        blocks.append(dict(
            branches=branches,
            wp=0.1 * jax.random.normal(nk(), (Cn, Cn * 3), jnp.float32),
            bp=vec_n(Cn),
        ))
        in_ch = Cn

    return dict(
        blocks=blocks,
        w_final=0.1 * jax.random.normal(nk(), (1, Cn), jnp.float32),
        b_final=vec_n(1),
    )


# ---------------------------------------------------------------------------
# Pure-JAX reference (independent path: lax.conv + explicit reflect-pad pooling)
# ---------------------------------------------------------------------------
def reference_forward(params, x, tp):
    eps = 1e-5
    stride = tp['stride']
    kernels = [tp['kernels'][n] for n in ('k1', 'k2', 'k3')]
    hi = jax.lax.Precision.HIGHEST

    def conv1d(h, w, b, k):
        pad = k // 2
        y = jax.lax.conv_general_dilated(
            h, w, window_strides=(1,), padding=[(pad, pad)],
            dimension_numbers=('NCH', 'OIH', 'NCH'), precision=hi)
        return y + b[None, :, None]

    def bnorm(h, g, be, m, v):
        return (h - m[None, :, None]) / jnp.sqrt(v[None, :, None] + eps) * g[None, :, None] \
            + be[None, :, None]

    def avgpool(h, k):
        L = h.shape[-1]
        Lout = (L + stride - 1) // stride
        p = max(0, (Lout - 1) * stride + k - L)
        pad_l, pad_r = p // 2, p - p // 2
        hp = jnp.pad(h, ((0, 0), (0, 0), (pad_l, pad_r)), mode='reflect')
        wins = jnp.stack([hp[:, :, m * stride:m * stride + k] for m in range(Lout)], axis=2)
        return wins.mean(axis=-1)

    out = x.astype(jnp.float32)
    for blk in params['blocks']:
        outs = []
        for k, br in zip(kernels, blk['branches']):
            h = jax.nn.relu(bnorm(conv1d(out, br['w1'], br['b1'], k),
                                  br['g1'], br['be1'], br['m1'], br['v1']))
            h = jax.nn.relu(bnorm(conv1d(h, br['w2'], br['b2'], k),
                                  br['g2'], br['be2'], br['m2'], br['v2']))
            outs.append(avgpool(h, k))
        cat = jnp.concatenate(outs, axis=1)
        out = jnp.einsum('oc,bcl->bol', blk['wp'], cat, precision=hi) + blk['bp'][None, :, None]
    out = jnp.einsum('oc,bcl->bol', params['w_final'], out, precision=hi) \
        + params['b_final'][None, :, None]
    return out


if __name__ == "__main__":
    training_params = {
        'data_dimensions': [4, 16],      # (input_channel, input_dim)
        'channel_n': 8,
        'stride': 2,
        'n_block': 2,
        'kernels': {'k1': 3, 'k2': 5, 'k3': 7},
        'regressor_type': 'generic',
        'xf_dict': {'FS_Extracted': 25.0},
    }

    key = jax.random.PRNGKey(0)
    k_x, k_p = jax.random.split(key)
    params = init_params(k_p, training_params)

    B = 2
    Cin, L = training_params['data_dimensions']
    x = jax.random.normal(k_x, (B, Cin, L), jnp.float32)

    out = feature_extractor_forward(params, x, training_params)
    out = jax.block_until_ready(out)

    # expected output length: L pooled n_block times with ceil(L/stride)  (16 -> 8 -> 4)
    L_last = L
    for _ in range(training_params['n_block']):
        L_last = (L_last + training_params['stride'] - 1) // training_params['stride']
    assert out.shape == (B, 1, L_last), out.shape
    assert bool(jnp.all(jnp.isfinite(out)))

    ref = reference_forward(params, x, training_params)
    max_err = float(jnp.max(jnp.abs(out - ref)))
    assert max_err < 3e-2, f"mismatch vs reference: {max_err}"

    print("KERNEL_OK")
</pallas_src>

<mosaic_0001>
module attributes {stable_mosaic.version = 11 : i64} {
  func.func @kernel(%arg0: i32, %arg1: memref<1x4x19xf32, #tpu.memory_space<vmem>>, %arg2: memref<272x256xf32, #tpu.memory_space<vmem>>, %arg3: memref<1x1x4xf32, #tpu.memory_space<vmem>>) attributes {dimension_semantics = [#tpu.dimension_semantics<parallel>], iteration_bounds = array<i64: 2>, scalar_prefetch = 0 : i64, scratch_operands = 0 : i64, tpu.core_type = #tpu.core_type<tc>, window_params = [{transform_indices = @transform_0, window_bounds = array<i64: 1, 4, 19>}, {pipeline_mode = #tpu.pipeline_mode<synchronous>, transform_indices = @transform_1, window_bounds = array<i64: 272, 256>}, {transform_indices = @transform_2, window_bounds = array<i64: 1, 1, 4>}]} {
    %c0 = arith.constant 0 : index
    %c0_0 = arith.constant 0 : index
    %c0_1 = arith.constant 0 : index
    %0 = vector.load %arg1[%c0, %c0_0, %c0_1] : memref<1x4x19xf32, #tpu.memory_space<vmem>>, vector<1x4x19xf32>
    %1 = vector.shape_cast %0 : vector<1x4x19xf32> to vector<4x19xf32>
    %c48 = arith.constant 48 : index
    %c0_2 = arith.constant 0 : index
    %2 = vector.load %arg2[%c48, %c0_2] : memref<272x256xf32, #tpu.memory_space<vmem>>, vector<24x4xf32>
    %c0_3 = arith.constant 0 : index
    %c0_4 = arith.constant 0 : index
    %3 = vector.load %arg2[%c0_3, %c0_4] : memref<272x256xf32, #tpu.memory_space<vmem>>, vector<24x28xf32>
    %cst = arith.constant 0.000000e+00 : f32
    %4 = vector.broadcast %cst : f32 to vector<4x3xf32>
    %5 = tpu.concatenate %4, %1, %4 in 1 : vector<4x3xf32>, vector<4x19xf32>, vector<4x3xf32> -> vector<4x25xf32>
    %6 = vector.extract_strided_slice %5 {offsets = [0, 0], sizes = [4, 19], strides = [1, 1]} : vector<4x25xf32> to vector<4x19xf32>
    %7 = vector.extract_strided_slice %5 {offsets = [0, 1], sizes = [4, 19], strides = [1, 1]} : vector<4x25xf32> to vector<4x19xf32>
    %8 = vector.extract_strided_slice %5 {offsets = [0, 2], sizes = [4, 19], strides = [1, 1]} : vector<4x25xf32> to vector<4x19xf32>
    %9 = vector.extract_strided_slice %5 {offsets = [0, 3], sizes = [4, 19], strides = [1, 1]} : vector<4x25xf32> to vector<4x19xf32>
    %10 = vector.extract_strided_slice %5 {offsets = [0, 4], sizes = [4, 19], strides = [1, 1]} : vector<4x25xf32> to vector<4x19xf32>
    %11 = vector.extract_strided_slice %5 {offsets = [0, 5], sizes = [4, 19], strides = [1, 1]} : vector<4x25xf32> to vector<4x19xf32>
    %12 = vector.extract_strided_slice %5 {offsets = [0, 6], sizes = [4, 19], strides = [1, 1]} : vector<4x25xf32> to vector<4x19xf32>
    %13 = tpu.concatenate %6, %7, %8, %9, %10, %11, %12 in 0 : vector<4x19xf32>, vector<4x19xf32>, vector<4x19xf32>, vector<4x19xf32>, vector<4x19xf32>, vector<4x19xf32>, vector<4x19xf32> -> vector<28x19xf32>
    %cst_5 = arith.constant dense<0.000000e+00> : vector<24x19xf32>
    %14 = tpu.matmul %3, %13, %cst_5 {dimension_numbers = #tpu.dot_dimension_numbers<[1], [0], [0], [1], [0, 0, 1, 1], [], []>} : vector<24x28xf32>, vector<28x19xf32>, vector<24x19xf32> -> vector<24x19xf32>
    %15 = vector.extract_strided_slice %2 {offsets = [0, 0], sizes = [24, 1], strides = [1, 1]} : vector<24x4xf32> to vector<24x1xf32>
    %16 = vector.broadcast %15 : vector<24x1xf32> to vector<24x19xf32>
    %17 = arith.mulf %14, %16 : vector<24x19xf32>
    %18 = vector.extract_strided_slice %2 {offsets = [0, 1], sizes = [24, 1], strides = [1, 1]} : vector<24x4xf32> to vector<24x1xf32>
    %19 = vector.broadcast %18 : vector<24x1xf32> to vector<24x19xf32>
    %20 = arith.addf %17, %19 : vector<24x19xf32>
    %cst_6 = arith.constant 0.000000e+00 : f32
    %21 = vector.broadcast %cst_6 : f32 to vector<24x19xf32>
    %22 = arith.maximumf %20, %21 : vector<24x19xf32>
    %c266 = arith.constant 266 : index
    %c0_7 = arith.constant 0 : index
    %23 = vector.load %arg2[%c266, %c0_7] : memref<272x256xf32, #tpu.memory_space<vmem>>, vector<1x19xf32>
    %24 = vector.broadcast %23 : vector<1x19xf32> to vector<24x19xf32>
    %25 = arith.mulf %22, %24 : vector<24x19xf32>
    %c24 = arith.constant 24 : index
    %c0_8 = arith.constant 0 : index
    %26 = vector.load %arg2[%c24, %c0_8] : memref<272x256xf32, #tpu.memory_space<vmem>>, vector<24x168xf32>
    %cst_9 = arith.constant 0.000000e+00 : f32
    %27 = vector.broadcast %cst_9 : f32 to vector<24x3xf32>
    %28 = tpu.concatenate %27, %25, %27 in 1 : vector<24x3xf32>, vector<24x19xf32>, vector<24x3xf32> -> vector<24x25xf32>
    %29 = vector.extract_strided_slice %28 {offsets = [0, 0], sizes = [24, 19], strides = [1, 1]} : vector<24x25xf32> to vector<24x19xf32>
    %30 = vector.extract_strided_slice %28 {offsets = [0, 1], sizes = [24, 19], strides = [1, 1]} : vector<24x25xf32> to vector<24x19xf32>
    %31 = vector.extract_strided_slice %28 {offsets = [0, 2], sizes = [24, 19], strides = [1, 1]} : vector<24x25xf32> to vector<24x19xf32>
    %32 = vector.extract_strided_slice %28 {offsets = [0, 3], sizes = [24, 19], strides = [1, 1]} : vector<24x25xf32> to vector<24x19xf32>
    %33 = vector.extract_strided_slice %28 {offsets = [0, 4], sizes = [24, 19], strides = [1, 1]} : vector<24x25xf32> to vector<24x19xf32>
    %34 = vector.extract_strided_slice %28 {offsets = [0, 5], sizes = [24, 19], strides = [1, 1]} : vector<24x25xf32> to vector<24x19xf32>
    %35 = vector.extract_strided_slice %28 {offsets = [0, 6], sizes = [24, 19], strides = [1, 1]} : vector<24x25xf32> to vector<24x19xf32>
    %36 = tpu.concatenate %29, %30, %31, %32, %33, %34, %35 in 0 : vector<24x19xf32>, vector<24x19xf32>, vector<24x19xf32>, vector<24x19xf32>, vector<24x19xf32>, vector<24x19xf32>, vector<24x19xf32> -> vector<168x19xf32>
    %cst_10 = arith.constant dense<0.000000e+00> : vector<24x19xf32>
    %37 = tpu.matmul %26, %36, %cst_10 {dimension_numbers = #tpu.dot_dimension_numbers<[1], [0], [0], [1], [0, 0, 1, 1], [], []>} : vector<24x168xf32>, vector<168x19xf32>, vector<24x19xf32> -> vector<24x19xf32>
    %38 = vector.extract_strided_slice %2 {offsets = [0, 2], sizes = [24, 1], strides = [1, 1]} : vector<24x4xf32> to vector<24x1xf32>
    %39 = vector.broadcast %38 : vector<24x1xf32> to vector<24x19xf32>
    %40 = arith.mulf %37, %39 : vector<24x19xf32>
    %41 = vector.extract_strided_slice %2 {offsets = [0, 3], sizes = [24, 1], strides = [1, 1]} : vector<24x4xf32> to vector<24x1xf32>
    %42 = vector.broadcast %41 : vector<24x1xf32> to vector<24x19xf32>
    %43 = arith.addf %40, %42 : vector<24x19xf32>
    %cst_11 = arith.constant 0.000000e+00 : f32
    %44 = vector.broadcast %cst_11 : f32 to vector<24x19xf32>
    %45 = arith.maximumf %43, %44 : vector<24x19xf32>
    %46 = vector.extract_strided_slice %45 {offsets = [0, 0], sizes = [8, 19], strides = [1, 1]} : vector<24x19xf32> to vector<8x19xf32>
    %c72 = arith.constant 72 : index
    %c0_12 = arith.constant 0 : index
    %47 = vector.load %arg2[%c72, %c0_12] : memref<272x256xf32, #tpu.memory_space<vmem>>, vector<19x11xf32>
    %cst_13 = arith.constant dense<0.000000e+00> : vector<8x11xf32>
    %48 = tpu.matmul %46, %47, %cst_13 {dimension_numbers = #tpu.dot_dimension_numbers<[1], [0], [0], [1], [0, 0, 1, 1], [], []>} : vector<8x19xf32>, vector<19x11xf32>, vector<8x11xf32> -> vector<8x11xf32>
    %49 = vector.extract_strided_slice %45 {offsets = [8, 0], sizes = [8, 19], strides = [1, 1]} : vector<24x19xf32> to vector<8x19xf32>
    %c91 = arith.constant 91 : index
    %c0_14 = arith.constant 0 : index
    %50 = vector.load %arg2[%c91, %c0_14] : memref<272x256xf32, #tpu.memory_space<vmem>>, vector<19x11xf32>
    %cst_15 = arith.constant dense<0.000000e+00> : vector<8x11xf32>
    %51 = tpu.matmul %49, %50, %cst_15 {dimension_numbers = #tpu.dot_dimension_numbers<[1], [0], [0], [1], [0, 0, 1, 1], [], []>} : vector<8x19xf32>, vector<19x11xf32>, vector<8x11xf32> -> vector<8x11xf32>
    %52 = vector.extract_strided_slice %45 {offsets = [16, 0], sizes = [8, 19], strides = [1, 1]} : vector<24x19xf32> to vector<8x19xf32>
    %c110 = arith.constant 110 : index
    %c0_16 = arith.constant 0 : index
    %53 = vector.load %arg2[%c110, %c0_16] : memref<272x256xf32, #tpu.memory_space<vmem>>, vector<19x11xf32>
    %cst_17 = arith.constant dense<0.000000e+00> : vector<8x11xf32>
    %54 = tpu.matmul %52, %53, %cst_17 {dimension_numbers = #tpu.dot_dimension_numbers<[1], [0], [0], [1], [0, 0, 1, 1], [], []>} : vector<8x19xf32>, vector<19x11xf32>, vector<8x11xf32> -> vector<8x11xf32>
    %55 = tpu.concatenate %48, %51, %54 in 0 : vector<8x11xf32>, vector<8x11xf32>, vector<8x11xf32> -> vector<24x11xf32>
    %c129 = arith.constant 129 : index
    %c0_18 = arith.constant 0 : index
    %56 = vector.load %arg2[%c129, %c0_18] : memref<272x256xf32, #tpu.memory_space<vmem>>, vector<8x24xf32>
    %cst_19 = arith.constant dense<0.000000e+00> : vector<8x11xf32>
    %57 = tpu.matmul %56, %55, %cst_19 {dimension_numbers = #tpu.dot_dimension_numbers<[1], [0], [0], [1], [0, 0, 1, 1], [], []>} : vector<8x24xf32>, vector<24x11xf32>, vector<8x11xf32> -> vector<8x11xf32>
    %c137 = arith.constant 137 : index
    %c0_20 = arith.constant 0 : index
    %58 = vector.load %arg2[%c137, %c0_20] : memref<272x256xf32, #tpu.memory_space<vmem>>, vector<8x1xf32>
    %59 = vector.broadcast %58 : vector<8x1xf32> to vector<8x11xf32>
    %60 = arith.addf %57, %59 : vector<8x11xf32>
    %c267 = arith.constant 267 : index
    %c0_21 = arith.constant 0 : index
    %61 = vector.load %arg2[%c267, %c0_21] : memref<272x256xf32, #tpu.memory_space<vmem>>, vector<1x11xf32>
    %62 = vector.broadcast %61 : vector<1x11xf32> to vector<8x11xf32>
    %63 = arith.mulf %60, %62 : vector<8x11xf32>
    %c193 = arith.constant 193 : index
    %c0_22 = arith.constant 0 : index
    %64 = vector.load %arg2[%c193, %c0_22] : memref<272x256xf32, #tpu.memory_space<vmem>>, vector<24x4xf32>
    %c145 = arith.constant 145 : index
    %c0_23 = arith.constant 0 : index
    %65 = vector.load %arg2[%c145, %c0_23] : memref<272x256xf32, #tpu.memory_space<vmem>>, vector<24x56xf32>
    %cst_24 = arith.constant 0.000000e+00 : f32
    %66 = vector.broadcast %cst_24 : f32 to vector<8x3xf32>
    %67 = tpu.concatenate %66, %63, %66 in 1 : vector<8x3xf32>, vector<8x11xf32>, vector<8x3xf32> -> vector<8x17xf32>
    %68 = vector.extract_strided_slice %67 {offsets = [0, 0], sizes = [8, 11], strides = [1, 1]} : vector<8x17xf32> to vector<8x11xf32>
    %69 = vector.extract_strided_slice %67 {offsets = [0, 1], sizes = [8, 11], strides = [1, 1]} : vector<8x17xf32> to vector<8x11xf32>
    %70 = vector.extract_strided_slice %67 {offsets = [0, 2], sizes = [8, 11], strides = [1, 1]} : vector<8x17xf32> to vector<8x11xf32>
    %71 = vector.extract_strided_slice %67 {offsets = [0, 3], sizes = [8, 11], strides = [1, 1]} : vector<8x17xf32> to vector<8x11xf32>
    %72 = vector.extract_strided_slice %67 {offsets = [0, 4], sizes = [8, 11], strides = [1, 1]} : vector<8x17xf32> to vector<8x11xf32>
    %73 = vector.extract_strided_slice %67 {offsets = [0, 5], sizes = [8, 11], strides = [1, 1]} : vector<8x17xf32> to vector<8x11xf32>
    %74 = vector.extract_strided_slice %67 {offsets = [0, 6], sizes = [8, 11], strides = [1, 1]} : vector<8x17xf32> to vector<8x11xf32>
    %75 = tpu.concatenate %68, %69, %70, %71, %72, %73, %74 in 0 : vector<8x11xf32>, vector<8x11xf32>, vector<8x11xf32>, vector<8x11xf32>, vector<8x11xf32>, vector<8x11xf32>, vector<8x11xf32> -> vector<56x11xf32>
    %cst_25 = arith.constant dense<0.000000e+00> : vector<24x11xf32>
    %76 = tpu.matmul %65, %75, %cst_25 {dimension_numbers = #tpu.dot_dimension_numbers<[1], [0], [0], [1], [0, 0, 1, 1], [], []>} : vector<24x56xf32>, vector<56x11xf32>, vector<24x11xf32> -> vector<24x11xf32>
    %77 = vector.extract_strided_slice %64 {offsets = [0, 0], sizes = [24, 1], strides = [1, 1]} : vector<24x4xf32> to vector<24x1xf32>
    %78 = vector.broadcast %77 : vector<24x1xf32> to vector<24x11xf32>
    %79 = arith.mulf %76, %78 : vector<24x11xf32>
    %80 = vector.extract_strided_slice %64 {offsets = [0, 1], sizes = [24, 1], strides = [1, 1]} : vector<24x4xf32> to vector<24x1xf32>
    %81 = vector.broadcast %80 : vector<24x1xf32> to vector<24x11xf32>
    %82 = arith.addf %79, %81 : vector<24x11xf32>
    %cst_26 = arith.constant 0.000000e+00 : f32
    %83 = vector.broadcast %cst_26 : f32 to vector<24x11xf32>
    %84 = arith.maximumf %82, %83 : vector<24x11xf32>
    %c267_27 = arith.constant 267 : index
    %c0_28 = arith.constant 0 : index
    %85 = vector.load %arg2[%c267_27, %c0_28] : memref<272x256xf32, #tpu.memory_space<vmem>>, vector<1x11xf32>
    %86 = vector.broadcast %85 : vector<1x11xf32> to vector<24x11xf32>
    %87 = arith.mulf %84, %86 : vector<24x11xf32>
    %c169 = arith.constant 169 : index
    %c0_29 = arith.constant 0 : index
    %88 = vector.load %arg2[%c169, %c0_29] : memref<272x256xf32, #tpu.memory_space<vmem>>, vector<24x168xf32>
    %cst_30 = arith.constant 0.000000e+00 : f32
    %89 = vector.broadcast %cst_30 : f32 to vector<24x3xf32>
    %90 = tpu.concatenate %89, %87, %89 in 1 : vector<24x3xf32>, vector<24x11xf32>, vector<24x3xf32> -> vector<24x17xf32>
    %91 = vector.extract_strided_slice %90 {offsets = [0, 0], sizes = [24, 11], strides = [1, 1]} : vector<24x17xf32> to vector<24x11xf32>
    %92 = vector.extract_strided_slice %90 {offsets = [0, 1], sizes = [24, 11], strides = [1, 1]} : vector<24x17xf32> to vector<24x11xf32>
    %93 = vector.extract_strided_slice %90 {offsets = [0, 2], sizes = [24, 11], strides = [1, 1]} : vector<24x17xf32> to vector<24x11xf32>
    %94 = vector.extract_strided_slice %90 {offsets = [0, 3], sizes = [24, 11], strides = [1, 1]} : vector<24x17xf32> to vector<24x11xf32>
    %95 = vector.extract_strided_slice %90 {offsets = [0, 4], sizes = [24, 11], strides = [1, 1]} : vector<24x17xf32> to vector<24x11xf32>
    %96 = vector.extract_strided_slice %90 {offsets = [0, 5], sizes = [24, 11], strides = [1, 1]} : vector<24x17xf32> to vector<24x11xf32>
    %97 = vector.extract_strided_slice %90 {offsets = [0, 6], sizes = [24, 11], strides = [1, 1]} : vector<24x17xf32> to vector<24x11xf32>
    %98 = tpu.concatenate %91, %92, %93, %94, %95, %96, %97 in 0 : vector<24x11xf32>, vector<24x11xf32>, vector<24x11xf32>, vector<24x11xf32>, vector<24x11xf32>, vector<24x11xf32>, vector<24x11xf32> -> vector<168x11xf32>
    %cst_31 = arith.constant dense<0.000000e+00> : vector<24x11xf32>
    %99 = tpu.matmul %88, %98, %cst_31 {dimension_numbers = #tpu.dot_dimension_numbers<[1], [0], [0], [1], [0, 0, 1, 1], [], []>} : vector<24x168xf32>, vector<168x11xf32>, vector<24x11xf32> -> vector<24x11xf32>
    %100 = vector.extract_strided_slice %64 {offsets = [0, 2], sizes = [24, 1], strides = [1, 1]} : vector<24x4xf32> to vector<24x1xf32>
    %101 = vector.broadcast %100 : vector<24x1xf32> to vector<24x11xf32>
    %102 = arith.mulf %99, %101 : vector<24x11xf32>
    %103 = vector.extract_strided_slice %64 {offsets = [0, 3], sizes = [24, 1], strides = [1, 1]} : vector<24x4xf32> to vector<24x1xf32>
    %104 = vector.broadcast %103 : vector<24x1xf32> to vector<24x11xf32>
    %105 = arith.addf %102, %104 : vector<24x11xf32>
    %cst_32 = arith.constant 0.000000e+00 : f32
    %106 = vector.broadcast %cst_32 : f32 to vector<24x11xf32>
    %107 = arith.maximumf %105, %106 : vector<24x11xf32>
    %108 = vector.extract_strided_slice %107 {offsets = [0, 0], sizes = [8, 11], strides = [1, 1]} : vector<24x11xf32> to vector<8x11xf32>
    %c217 = arith.constant 217 : index
    %c0_33 = arith.constant 0 : index
    %109 = vector.load %arg2[%c217, %c0_33] : memref<272x256xf32, #tpu.memory_space<vmem>>, vector<11x7xf32>
    %cst_34 = arith.constant dense<0.000000e+00> : vector<8x7xf32>
    %110 = tpu.matmul %108, %109, %cst_34 {dimension_numbers = #tpu.dot_dimension_numbers<[1], [0], [0], [1], [0, 0, 1, 1], [], []>} : vector<8x11xf32>, vector<11x7xf32>, vector<8x7xf32> -> vector<8x7xf32>
    %111 = vector.extract_strided_slice %107 {offsets = [8, 0], sizes = [8, 11], strides = [1, 1]} : vector<24x11xf32> to vector<8x11xf32>
    %c228 = arith.constant 228 : index
    %c0_35 = arith.constant 0 : index
    %112 = vector.load %arg2[%c228, %c0_35] : memref<272x256xf32, #tpu.memory_space<vmem>>, vector<11x7xf32>
    %cst_36 = arith.constant dense<0.000000e+00> : vector<8x7xf32>
    %113 = tpu.matmul %111, %112, %cst_36 {dimension_numbers = #tpu.dot_dimension_numbers<[1], [0], [0], [1], [0, 0, 1, 1], [], []>} : vector<8x11xf32>, vector<11x7xf32>, vector<8x7xf32> -> vector<8x7xf32>
    %114 = vector.extract_strided_slice %107 {offsets = [16, 0], sizes = [8, 11], strides = [1, 1]} : vector<24x11xf32> to vector<8x11xf32>
    %c239 = arith.constant 239 : index
    %c0_37 = arith.constant 0 : index
    %115 = vector.load %arg2[%c239, %c0_37] : memref<272x256xf32, #tpu.memory_space<vmem>>, vector<11x7xf32>
    %cst_38 = arith.constant dense<0.000000e+00> : vector<8x7xf32>
    %116 = tpu.matmul %114, %115, %cst_38 {dimension_numbers = #tpu.dot_dimension_numbers<[1], [0], [0], [1], [0, 0, 1, 1], [], []>} : vector<8x11xf32>, vector<11x7xf32>, vector<8x7xf32> -> vector<8x7xf32>
    %117 = tpu.concatenate %110, %113, %116 in 0 : vector<8x7xf32>, vector<8x7xf32>, vector<8x7xf32> -> vector<24x7xf32>
    %c250 = arith.constant 250 : index
    %c0_39 = arith.constant 0 : index
    %118 = vector.load %arg2[%c250, %c0_39] : memref<272x256xf32, #tpu.memory_space<vmem>>, vector<8x24xf32>
    %cst_40 = arith.constant dense<0.000000e+00> : vector<8x7xf32>
    %119 = tpu.matmul %118, %117, %cst_40 {dimension_numbers = #tpu.dot_dimension_numbers<[1], [0], [0], [1], [0, 0, 1, 1], [], []>} : vector<8x24xf32>, vector<24x7xf32>, vector<8x7xf32> -> vector<8x7xf32>
    %c258 = arith.constant 258 : index
    %c0_41 = arith.constant 0 : index
    %120 = vector.load %arg2[%c258, %c0_41] : memref<272x256xf32, #tpu.memory_space<vmem>>, vector<8x1xf32>
    %121 = vector.broadcast %120 : vector<8x1xf32> to vector<8x7xf32>
    %122 = arith.addf %119, %121 : vector<8x7xf32>
    %c268 = arith.constant 268 : index
    %c0_42 = arith.constant 0 : index
    %123 = vector.load %arg2[%c268, %c0_42] : memref<272x256xf32, #tpu.memory_space<vmem>>, vector<1x8xf32>
    %cst_43 = arith.constant dense<0.000000e+00> : vector<1x7xf32>
    %124 = tpu.matmul %123, %122, %cst_43 {dimension_numbers = #tpu.dot_dimension_numbers<[1], [0], [0], [1], [0, 0, 1, 1], [], []>} : vector<1x8xf32>, vector<8x7xf32>, vector<1x7xf32> -> vector<1x7xf32>
    %c269 = arith.constant 269 : index
    %c0_44 = arith.constant 0 : index
    %125 = vector.load %arg2[%c269, %c0_44] : memref<272x256xf32, #tpu.memory_space<vmem>>, vector<1x1xf32>
    %126 = vector.broadcast %125 : vector<1x1xf32> to vector<1x7xf32>
    %127 = arith.addf %124, %126 : vector<1x7xf32>
    %128 = vector.extract_strided_slice %127 {offsets = [0, 0], sizes = [1, 4], strides = [1, 1]} : vector<1x7xf32> to vector<1x4xf32>
    %c0_45 = arith.constant 0 : index
    %c0_46 = arith.constant 0 : index
    %c0_47 = arith.constant 0 : index
    %129 = vector.load %arg3[%c0_45, %c0_46, %c0_47] : memref<1x1x4xf32, #tpu.memory_space<vmem>>, vector<1x1x4xf32>
    %130 = vector.shape_cast %129 : vector<1x1x4xf32> to vector<1x4xf32>
    %131 = vector.shape_cast %128 : vector<1x4xf32> to vector<1x1x4xf32>
    tpu.vector_store %arg3[%c0_45, %c0_46, %c0_47], %131 {strides = array<i32>} : memref<1x1x4xf32, #tpu.memory_space<vmem>>, vector<1x1x4xf32>,
    return
  }
  func.func @transform_0(%arg0: i32) -> (i32, i32, i32) {
    %c0_i32 = arith.constant 0 : i32
    %c0_i32_0 = arith.constant 0 : i32
    %c0_i32_1 = arith.constant 0 : i32
    return %arg0, %c0_i32, %c0_i32_0 : i32, i32, i32
  }
  func.func @transform_1(%arg0: i32) -> (i32, i32) {
    %c0_i32 = arith.constant 0 : i32
    %c0_i32_0 = arith.constant 0 : i32
    %c0_i32_1 = arith.constant 0 : i32
    return %c0_i32, %c0_i32_0 : i32, i32
  }
  func.func @transform_2(%arg0: i32) -> (i32, i32, i32) {
    %c0_i32 = arith.constant 0 : i32
    %c0_i32_0 = arith.constant 0 : i32
    %c0_i32_1 = arith.constant 0 : i32
    return %arg0, %c0_i32, %c0_i32_0 : i32, i32, i32
  }
}

</mosaic_0001>

<llo_original>
// kernel: tpu_custom_call.1
$region0: #{tpu_custom_call.1}
  #allocation0 [shape = 'u32[]', space=smem, size = 0x4, offset = 0x4, fixed_abs, tag = 'smem constant byte address 0x4 - core index']
  #allocation1 [shape = 'u32[144,128]{1,0:T(1,128)}', space=vmem, size = 0x12000, scoped, tag = 'internal scratch']
  %s0 = inlined_call_operand.hbm [shape: f32[2,4,19], index: 0, kind: input, shape index: {}]
  %s1 = inlined_call_operand.hbm [shape: f32[272,256], index: 1, kind: input, shape index: {}]
  %s2 = inlined_call_operand.hbm [shape: f32[2,1,4], index: 2, kind: output, shape index: {}]
  %s3 = sld [smem:[#allocation0]]
  $region49: #{tpu_custom_call.1} parent=0
    _
  %s5 = ssub.s32 1, %s3
  %s6 = scalar_select 0, %s5, %s3
  $region1: #{tpu_custom_call.1} parent=0
    #allocation2 [shape = 'u8[4096]{0}', space=vmem, size = 0x1000, scoped, tag = 'input window, operand 0']
    #allocation3 [shape = 's32[2]{0}', space=sflag, size = 0x8, scoped, tag = 'scoped memory for tpu_custom_call.1']
    #allocation4 [shape = 's32[2]{0}', space=sflag, size = 0x8, scoped, tag = 'scoped memory for tpu_custom_call.1']
    #allocation5 [shape = 'u8[278528]{0}', space=vmem, size = 0x44000, scoped, tag = 'input window, operand 1, single buffered']
    #allocation6 [shape = 's32[1]{0}', space=sflag, size = 0x4, scoped, tag = 'scoped memory for tpu_custom_call.1']
    #allocation7 [shape = 'u8[1024]{0}', space=vmem, size = 0x400, scoped, tag = 'output window, operand 0']
    %7 = vsyncpa [#allocation3], 0
    %s8 = scalar_lea.sflag [#allocation3], 1
    %9 = vsyncpa %s8, 0
    %10 = vsyncpa [#allocation6], 0
    %11 = vsyncpa [#allocation4], 0
    %s12 = scalar_lea.sflag [#allocation4], 1
    %13 = vsyncpa %s12, 0
    loop: start=0, step=1, limit=4
    $region2: #{tpu_custom_call.1} parent=1 // loop_pre_header
      _
    $region3: #{tpu_custom_call.1} parent=1 // loop_header
      %s15 = sphi 0, %s19
      %p16 = scmp.ge.s32.totalorder %s15, 4
      %s25 = sphi 0, %s27
      %s28 = sphi 0, %s25
      %s29 = sphi 0, %s28
      %s45 = sphi 0, %s29
      %s49 = sphi 0, %s49
      %s51 = sphi 0, %s49
      %s52 = sphi 0, %s51
      %s66 = sphi 0, %s52
      %s72 = sphi 0, %s74
      %s75 = sphi 0, %s72
      %s76 = sphi 0, %s75
      %s92 = sphi 0, %s76
    $region4: #{tpu_custom_call.1} parent=1 // loop_header_branch
      %18 = sbr.rel (%p16) target = $region8
    $region5: #{tpu_custom_call.1} parent=1 // loop_body
      %s20 = ssub.s32 %s15, 1
      %s21 = ssub.s32 %s15, 2
      %s22 = sadd.s32 %s15, 1
      %s23 = ssub.s32 %s15, %s22
      %p24 = scmp.eq.s32.totalorder %s23, 0
      %s26 = sadd.s32 %s25, 1
      %s27 = scalar_select %p24, %s25, %s26
      %p30 = pneg %p24
      %p31 = scmp.eq.s32.totalorder %s15, 1
      %p32 = por %p30, %p31
      %p33 = scmp.ne.s32.totalorder %s25, %s28
      %p34 = scmp.eq.s32.totalorder %s15, 0
      %p35 = por %p33, %p34
      %p36 = scmp.ne.s32.totalorder %s25, %s28
      %p37 = scmp.eq.s32.totalorder %s20, 1
      %p38 = por %p36, %p37
      %p39 = scmp.ne.s32.totalorder %s28, %s29
      %p40 = scmp.eq.s32.totalorder %s20, 0
      %p41 = por %p39, %p40
      %p42 = scmp.ne.s32.totalorder %s28, %s29
      %p43 = scmp.eq.s32.totalorder %s21, 1
      %p44 = por %p42, %p43
      %p46 = scmp.ne.s32.totalorder %s29, %s45
      %p47 = scmp.eq.s32.totalorder %s21, 0
      %p48 = por %p46, %p47
      %s50 = sadd.s32 %s49, 1
      %p53 = scmp.eq.s32.totalorder %s15, 1
      %p54 = scmp.ne.s32.totalorder %s49, %s51
      %p55 = scmp.eq.s32.totalorder %s15, 0
      %p56 = por %p54, %p55
      %p57 = scmp.ne.s32.totalorder %s49, %s51
      %p58 = scmp.eq.s32.totalorder %s20, 1
      %p59 = por %p57, %p58
      %p60 = scmp.ne.s32.totalorder %s51, %s52
      %p61 = scmp.eq.s32.totalorder %s20, 0
      %p62 = por %p60, %p61
      %p63 = scmp.ne.s32.totalorder %s51, %s52
      %p64 = scmp.eq.s32.totalorder %s21, 1
      %p65 = por %p63, %p64
      %p67 = scmp.ne.s32.totalorder %s52, %s66
      %p68 = scmp.eq.s32.totalorder %s21, 0
      %p69 = por %p67, %p68
      %s70 = ssub.s32 %s15, %s22
      %p71 = scmp.eq.s32.totalorder %s70, 0
      %s73 = sadd.s32 %s72, 1
      %s74 = scalar_select %p71, %s72, %s73
      %p77 = pneg %p71
      %p78 = scmp.eq.s32.totalorder %s15, 1
      %p79 = por %p77, %p78
      %p80 = scmp.ne.s32.totalorder %s72, %s75
      %p81 = scmp.eq.s32.totalorder %s15, 0
      %p82 = por %p80, %p81
      %p83 = scmp.ne.s32.totalorder %s72, %s75
      %p84 = scmp.eq.s32.totalorder %s20, 1
      %p85 = por %p83, %p84
      %p86 = scmp.ne.s32.totalorder %s75, %s76
      %p87 = scmp.eq.s32.totalorder %s20, 0
      %p88 = por %p86, %p87
      %p89 = scmp.ne.s32.totalorder %s75, %s76
      %p90 = scmp.eq.s32.totalorder %s21, 1
      %p91 = por %p89, %p90
      %p93 = scmp.ne.s32.totalorder %s76, %s92
      %p94 = scmp.eq.s32.totalorder %s21, 0
      %p95 = por %p93, %p94
      %p96 = scmp.le.s32.totalorder 1, %s15
      %p97 = scmp.lt.s32.totalorder %s15, 3
      %p98 = pnand %p96, %p97
      %p99 = pneg %p98
      // Predicated region
      $region9: #{tpu_custom_call.1} parent=5 // pred_check
        _
      $region10: #{tpu_custom_call.1} parent=5 // pred_check_branch
        %101 = sbr.rel (%p98) target = $region12
      $region11: #{tpu_custom_call.1} parent=5 // pred_region
        %s102 = ssub.s32 %s15, 1
        // Predicated region
        $region13: #{tpu_custom_call.1} parent=11 // pred_check
          %p103 = pneg %p62
        $region14: #{tpu_custom_call.1} parent=11 // pred_check_branch
          %105 = sbr.rel (%p103) target = $region16
        $region15: #{tpu_custom_call.1} parent=11 // pred_region
          %s107 = ssub.s32 8704, 8704
          %108 = vsyncadd [#allocation6], %s107
          %s109 = sshll.u32 [#allocation5], 4
          %s110 = int_to_ptr.vmem [resolvable:$true] %s109
          %115 = dma.hbm_to_vmem [thread:$0]  %s1, 8704, %s110, [#allocation6], 256, 256, 16
        $region16: #{tpu_custom_call.1} parent=11 // pred_fallthru
          _
      $region12: #{tpu_custom_call.1} parent=5 // pred_fallthru
        _
      %p116 = scmp.lt.s32.totalorder %s15, 2
      // Predicated region
      $region17: #{tpu_custom_call.1} parent=5 // pred_check
        %p117 = pneg %p116
      $region18: #{tpu_custom_call.1} parent=5 // pred_check_branch
        %119 = sbr.rel (%p117) target = $region20
      $region19: #{tpu_custom_call.1} parent=5 // pred_region
        // Predicated region
        $region21: #{tpu_custom_call.1} parent=19 // pred_check
          %p120 = pneg %p35
        $region22: #{tpu_custom_call.1} parent=19 // pred_check_branch
          %122 = sbr.rel (%p120) target = $region24
        $region23: #{tpu_custom_call.1} parent=19 // pred_region
          %s123 = sand.u32 %s25, 1
          %s124 = scalar_lea.sflag [#allocation3], %s123
          %s125 = sand.u32 %s25, 1
          %s126 = smul.addr %s125, 4
          %s127 = scalar_lea.vmem [#allocation2], %s126
          %s129 = ssub.s32 64, 64
          %130 = vsyncadd %s124, %s129
          %s131 = smul.addr %s15, 64
          %s132 = scalar_lea.hbm %s0, %s131
          %s134 = sshll.u32 %s127, 4
          %s135 = int_to_ptr.vmem [resolvable:$true] %s134
          %137 = dma.hbm_to_vmem [thread:$0]  %s132, 64, %s135, %s124
        $region24: #{tpu_custom_call.1} parent=19 // pred_fallthru
          _
      $region20: #{tpu_custom_call.1} parent=5 // pred_fallthru
        _
      %p138 = scmp.le.s32.totalorder 1, %s15
      %p139 = scmp.lt.s32.totalorder %s15, 3
      %p140 = pnand %p138, %p139
      %p141 = pneg %p140
      // Predicated region
      $region25: #{tpu_custom_call.1} parent=5 // pred_check
        _
      $region26: #{tpu_custom_call.1} parent=5 // pred_check_branch
        %143 = sbr.rel (%p140) target = $region28
      $region27: #{tpu_custom_call.1} parent=5 // pred_region
        %s144 = ssub.s32 %s15, 1
        %s145 = sand.u32 %s28, 1
        %s146 = scalar_lea.sflag [#allocation3], %s145
        %s147 = sand.u32 %s28, 1
        %s148 = smul.addr %s147, 4
        %s149 = scalar_lea.vmem [#allocation2], %s148
        // Predicated region
        $region29: #{tpu_custom_call.1} parent=27 // pred_check
          %p150 = pneg %p41
        $region30: #{tpu_custom_call.1} parent=27 // pred_check_branch
          %152 = sbr.rel (%p150) target = $region32
        $region31: #{tpu_custom_call.1} parent=27 // pred_region
          %153 = dma.done %s146, 64
        $region32: #{tpu_custom_call.1} parent=27 // pred_fallthru
          _
        // Predicated region
        $region33: #{tpu_custom_call.1} parent=27 // pred_check
          %p154 = pneg %p62
        $region34: #{tpu_custom_call.1} parent=27 // pred_check_branch
          %156 = sbr.rel (%p154) target = $region36
        $region35: #{tpu_custom_call.1} parent=27 // pred_region
          %157 = dma.done [#allocation6], 8704
        $region36: #{tpu_custom_call.1} parent=27 // pred_fallthru
          _
        %s158 = sand.u32 %s28, 1
        %s159 = scalar_lea.sflag [#allocation3], %s158
        %s160 = sand.u32 %s28, 1
        %s161 = smul.addr %s160, 4
        %s162 = scalar_lea.vmem [#allocation2], %s161
        %p163 = pneg %p41
        %p164 = pneg %p38
        %p165 = pneg %p62
        %p166 = pneg %p59
        %p167 = pneg %p88
        %p168 = pneg %p85
        %s169 = sand.u32 %s75, 1
        %s170 = scalar_lea.sflag [#allocation4], %s169
        %s171 = sand.u32 %s75, 1
        %s172 = scalar_lea.vmem [#allocation7], %s171
        %v173 = vld [vmem:[%s149] sm:$0xf]
        %v174 = vld [vmem:[#allocation5 + $0x60] sm:$0xff]
        %v175 = vld [vmem:[#allocation5 + $0x70] sm:$0xff]
        %v176 = vld [vmem:[#allocation5 + $0x80] sm:$0xff]
        %v177 = vld [vmem:[#allocation5] sm:$0xff]
        %v178 = vld [vmem:[#allocation5 + $0x10] sm:$0xff]
        %v179 = vld [vmem:[#allocation5 + $0x20] sm:$0xff]
        %181 = vrot.lane.b32.xlu0 %v173, 3
        %v182 = vpop.permute.xlu0 %181
        %vm184 = vcmask 23552
        %v185 = vsel %vm184, 0.0, %v182
        %vm186 = vcmask 179200
        %v187 = vsel %vm186, %v185, 0.0
        %v189 = vrot.slane %v187, 4
        %190 = vrot.lane.b32.xlu0 %v189, 127
        %v191 = vpop.permute.xlu0 %190
        %193 = vrot.lane.b32.xlu0 %v187, 126
        %v194 = vpop.permute.xlu0 %193
        %196 = vrot.lane.b32.xlu0 %v189, 125
        %v197 = vpop.permute.xlu0 %196
        %199 = vrot.lane.b32.xlu0 %v187, 124
        %v200 = vpop.permute.xlu0 %199
        %202 = vrot.lane.b32.xlu0 %v189, 123
        %v203 = vpop.permute.xlu0 %202
        %205 = vrot.lane.b32.xlu0 %v187, 122
        %v206 = vpop.permute.xlu0 %205
        %vm207 = vcmask 1043456
        %v208 = vsel %vm207, %v187, %v191
        %v209 = vsel %vm207, %v194, %v197
        %v210 = vsel %vm207, %v200, %v203
        %vm211 = vcmask 228352
        %v213 = vsel %vm211, %v177, 0
        %v216 = vsel %vm211, %v178, 0
        %v219 = vsel %vm211, %v179, 0
        %v221 = vsel %vm207, %v206, 0
        %223 = vmatprep.subr.mxu0 0.0
        %224 = vmatpush1.msra.mxu0 %v208
        %225 = vmatprep.subr.mxu0 0.0
        %226 = vmatpush1.msra.mxu0 %v209
        %227 = vmatprep.subr.mxu0 0.0
        %228 = vmatpush1.msra.mxu0 %v210
        %229 = vmatprep.subr.mxu0 0.0
        %230 = vmatpush1.msra.mxu0 %v221
        %231 = vmatprep.subr.mxu0 0.0
        %232 = vmatpush1.msra.mxu0 0.0
        %233 = vmatprep.subr.mxu0 0.0
        %234 = vmatpush1.msra.mxu0 0.0
        %235 = vmatprep.subr.mxu0 0.0
        %236 = vmatpush1.msra.mxu0 0.0
        %237 = vmatprep.subr.mxu0 0.0
        %238 = vmatpush1.msra.mxu0 0.0
        %239 = vmatprep.subr.mxu0 0.0
        %240 = vmatpush1.msra.mxu0 0.0
        %241 = vmatprep.subr.mxu0 0.0
        %242 = vmatpush1.msra.mxu0 0.0
        %243 = vmatprep.subr.mxu0 0.0
        %244 = vmatpush1.msra.mxu0 0.0
        %245 = vmatprep.subr.mxu0 0.0
        %246 = vmatpush1.msra.mxu0 0.0
        %247 = vmatprep.subr.mxu0 0.0
        %248 = vmatpush1.msra.mxu0 0.0
        %249 = vmatprep.subr.mxu0 0.0
        %250 = vmatpush1.msra.mxu0 0.0
        %251 = vmatprep.subr.mxu0 0.0
        %252 = vmatpush1.msra.mxu0 0.0
        %253 = vmatprep.subr.mxu0 0.0
        %254 = vmatpush1.msra.mxu0 0.0
        %255 = vmatprep.subr.mxu0 0.0
        %256 = vmatpush1.msra.mxu0 0.0
        %257 = vmatprep.subr.mxu0 0.0
        %258 = vmatpush1.msra.mxu0 0.0
        %259 = vmatprep.subr.mxu0 0.0
        %260 = vmatpush1.msra.mxu0 0.0
        %261 = vmatprep.subr.mxu0 0.0
        %262 = vmatpush1.msra.mxu0 0.0
        %263 = vmatprep.subr.mxu0 0.0
        %264 = vmatpush1.msra.mxu0 0.0
        %265 = vmatprep.subr.mxu0 0.0
        %266 = vmatpush1.msra.mxu0 0.0
        %267 = vmatprep.subr.mxu0 0.0
        %268 = vmatpush1.msra.mxu0 0.0
        %269 = vmatprep.subr.mxu0 0.0
        %270 = vmatpush1.msra.mxu0 0.0
        %271 = vmatprep.subr.mxu0 0.0
        %272 = vmatpush1.msra.mxu0 0.0
        %273 = vmatprep.subr.mxu0 0.0
        %274 = vmatpush1.msra.mxu0 0.0
        %275 = vmatprep.subr.mxu0 0.0
        %276 = vmatpush1.msra.mxu0 0.0
        %277 = vmatprep.subr.mxu0 0.0
        %278 = vmatpush1.msra.mxu0 0.0
        %279 = vmatprep.subr.mxu0 0.0
        %280 = vmatpush1.msra.mxu0 0.0
        %281 = vmatprep.subr.mxu0 0.0
        %282 = vmatpush1.msra.mxu0 0.0
        %283 = vmatprep.subr.mxu0 0.0
        %284 = vmatpush1.msra.mxu0 0.0
        %285 = vmatprep.subr.mxu0 0.0
        %286 = vmatpush1.msra.mxu0 0.0
        %287 = vmatprep.mubr.f32.mxu0 0.0
        %288 = vmatmul.mubr.f32.gmra.mrb[0].mxu0 %v213
        %v289 = vpop.f32.mrb[0].mxu0
        %v290 = vadd.f32 0.0, %v289
        %v291 = vpop.f32.mrb[0].mxu0
        %292 = vmatprep.mubr.f32.mxu0 0.0
        %293 = vmatmul.mubr.f32.gmra.mrb[0].mxu0 %v216
        %v294 = vpop.f32.mrb[0].mxu0
        %v295 = vadd.f32 0.0, %v294
        %v296 = vpop.f32.mrb[0].mxu0
        %297 = vmatprep.mubr.f32.mxu0 0.0
        %298 = vmatmul.mubr.f32.gmra.mrb[0].mxu0 %v219
        %v299 = vpop.f32.mrb[0].mxu0
        %v300 = vadd.f32 0.0, %v299
        %v301 = vpop.f32.mrb[0].mxu0
        %302 = vdwg.mxu0
        %304 = vset.pattern.permute.xlu0 0
        %305 = vperm.xlu0 %304, %v174
        %v306 = vpop.permute.xlu0 %305
        %309 = vset.pattern.permute.xlu0 0
        %310 = vperm.xlu0 %309, %v175
        %v311 = vpop.permute.xlu0 %310
        %314 = vset.pattern.permute.xlu0 0
        %315 = vperm.xlu0 %314, %v176
        %v316 = vpop.permute.xlu0 %315
        %v318 = vmul.f32 %v290, %v306
        %v319 = vmul.f32 %v295, %v311
        %v320 = vmul.f32 %v300, %v316
        %321 = vset.pattern.permute.xlu0 1
        %322 = vperm.xlu0 %321, %v174
        %v323 = vpop.permute.xlu0 %322
        %325 = vset.pattern.permute.xlu0 1
        %326 = vperm.xlu0 %325, %v175
        %v327 = vpop.permute.xlu0 %326
        %329 = vset.pattern.permute.xlu0 1
        %330 = vperm.xlu0 %329, %v176
        %v331 = vpop.permute.xlu0 %330
        %v333 = vadd.f32 %v318, %v323
        %v334 = vadd.f32 %v319, %v327
        %v335 = vadd.f32 %v320, %v331
        %v336 = vmax.f32 %v333, 0.0
        %v337 = vmax.f32 %v334, 0.0
        %v338 = vmax.f32 %v335, 0.0
        %v339 = vld [vmem:[#allocation5 + $0x212] ss:$0 sm:$0xff]
        %v340 = vmul.f32 %v336, %v339
        %v341 = vmul.f32 %v337, %v339
        %v342 = vmul.f32 %v338, %v339
        %v343 = vld [vmem:[#allocation5 + $0x30] sm:$0xff]
        %v344 = vld [vmem:[#allocation5 + $0x38] sm:$0xff]
        %v345 = vld [vmem:[#allocation5 + $0x40] sm:$0xff]
        %v346 = vld [vmem:[#allocation5 + $0x48] sm:$0xff]
        %v347 = vld [vmem:[#allocation5 + $0x50] sm:$0xff]
        %v348 = vld [vmem:[#allocation5 + $0x58] sm:$0xff]
        %352 = vrot.lane.b32.xlu0 %v340, 3
        %v353 = vpop.permute.xlu0 %352
        %354 = vrot.lane.b32.xlu0 %v341, 3
        %v355 = vpop.permute.xlu0 %354
        %356 = vrot.lane.b32.xlu0 %v342, 3
        %v357 = vpop.permute.xlu0 %356
        %v361 = vsel %vm184, 0.0, %v353
        %v362 = vsel %vm184, 0.0, %v355
        %v363 = vsel %vm184, 0.0, %v357
        %v364 = vsel %vm186, %v361, 0.0
        %v365 = vsel %vm186, %v362, 0.0
        %v366 = vsel %vm186, %v363, 0.0
        %370 = vrot.lane.b32.xlu0 %v364, 127
        %v371 = vpop.permute.xlu0 %370
        %372 = vrot.lane.b32.xlu0 %v365, 127
        %v373 = vpop.permute.xlu0 %372
        %374 = vrot.lane.b32.xlu0 %v366, 127
        %v375 = vpop.permute.xlu0 %374
        %379 = vrot.lane.b32.xlu0 %v364, 126
        %v380 = vpop.permute.xlu0 %379
        %381 = vrot.lane.b32.xlu0 %v365, 126
        %v382 = vpop.permute.xlu0 %381
        %383 = vrot.lane.b32.xlu0 %v366, 126
        %v384 = vpop.permute.xlu0 %383
        %388 = vrot.lane.b32.xlu0 %v364, 125
        %v389 = vpop.permute.xlu0 %388
        %390 = vrot.lane.b32.xlu0 %v365, 125
        %v391 = vpop.permute.xlu0 %390
        %392 = vrot.lane.b32.xlu0 %v366, 125
        %v393 = vpop.permute.xlu0 %392
        %397 = vrot.lane.b32.xlu0 %v364, 124
        %v398 = vpop.permute.xlu0 %397
        %399 = vrot.lane.b32.xlu0 %v365, 124
        %v400 = vpop.permute.xlu0 %399
        %401 = vrot.lane.b32.xlu0 %v366, 124
        %v402 = vpop.permute.xlu0 %401
        %406 = vrot.lane.b32.xlu0 %v364, 123
        %v407 = vpop.permute.xlu0 %406
        %408 = vrot.lane.b32.xlu0 %v365, 123
        %v409 = vpop.permute.xlu0 %408
        %410 = vrot.lane.b32.xlu0 %v366, 123
        %v411 = vpop.permute.xlu0 %410
        %415 = vrot.lane.b32.xlu0 %v364, 122
        %v416 = vpop.permute.xlu0 %415
        %417 = vrot.lane.b32.xlu0 %v365, 122
        %v418 = vpop.permute.xlu0 %417
        %419 = vrot.lane.b32.xlu0 %v366, 122
        %v420 = vpop.permute.xlu0 %419
        %vm424 = vcmask 326656
        %v426 = vsel %vm424, %v344, 0
        %v429 = vsel %vm424, %v346, 0
        %v432 = vsel %vm424, %v348, 0
        %434 = vmatprep.subr.mxu0 0.0
        %435 = vmatpush1.msra.mxu0 %v364
        %436 = vmatprep.subr.mxu0 0.0
        %437 = vmatpush1.msra.mxu0 %v365
        %438 = vmatprep.subr.mxu0 0.0
        %439 = vmatpush1.msra.mxu0 %v366
        %440 = vmatprep.subr.mxu0 0.0
        %441 = vmatpush1.msra.mxu0 %v371
        %442 = vmatprep.subr.mxu0 0.0
        %443 = vmatpush1.msra.mxu0 %v373
        %444 = vmatprep.subr.mxu0 0.0
        %445 = vmatpush1.msra.mxu0 %v375
        %446 = vmatprep.subr.mxu0 0.0
        %447 = vmatpush1.msra.mxu0 %v380
        %448 = vmatprep.subr.mxu0 0.0
        %449 = vmatpush1.msra.mxu0 %v382
        %450 = vmatprep.subr.mxu0 0.0
        %451 = vmatpush1.msra.mxu0 %v384
        %452 = vmatprep.subr.mxu0 0.0
        %453 = vmatpush1.msra.mxu0 %v389
        %454 = vmatprep.subr.mxu0 0.0
        %455 = vmatpush1.msra.mxu0 %v391
        %456 = vmatprep.subr.mxu0 0.0
        %457 = vmatpush1.msra.mxu0 %v393
        %458 = vmatprep.subr.mxu0 0.0
        %459 = vmatpush1.msra.mxu0 %v398
        %460 = vmatprep.subr.mxu0 0.0
        %461 = vmatpush1.msra.mxu0 %v400
        %462 = vmatprep.subr.mxu0 0.0
        %463 = vmatpush1.msra.mxu0 %v402
        %464 = vmatprep.subr.mxu0 0.0
        %465 = vmatpush1.msra.mxu0 %v407
        %466 = vmatprep.subr.mxu0 0.0
        %467 = vmatpush1.msra.mxu0 %v409
        %468 = vmatprep.subr.mxu0 0.0
        %469 = vmatpush1.msra.mxu0 %v411
        %470 = vmatprep.subr.mxu0 0.0
        %471 = vmatpush1.msra.mxu0 %v416
        %472 = vmatprep.subr.mxu0 0.0
        %473 = vmatpush1.msra.mxu0 %v418
        %474 = vmatprep.subr.mxu0 0.0
        %475 = vmatpush1.msra.mxu0 %v420
        %476 = vmatprep.subr.mxu0 0.0
        %477 = vmatpush1.msra.mxu0 0.0
        %478 = vmatprep.subr.mxu0 0.0
        %479 = vmatpush1.msra.mxu0 0.0
        %480 = vmatprep.subr.mxu0 0.0
        %481 = vmatpush1.msra.mxu0 0.0
        %482 = vmatprep.subr.mxu0 0.0
        %483 = vmatpush1.msra.mxu0 0.0
        %484 = vmatprep.subr.mxu0 0.0
        %485 = vmatpush1.msra.mxu0 0.0
        %486 = vmatprep.subr.mxu0 0.0
        %487 = vmatpush1.msra.mxu0 0.0
        %488 = vmatprep.subr.mxu0 0.0
        %489 = vmatpush1.msra.mxu0 0.0
        %490 = vmatprep.subr.mxu0 0.0
        %491 = vmatpush1.msra.mxu0 0.0
        %492 = vmatprep.subr.mxu0 0.0
        %493 = vmatpush1.msra.mxu0 0.0
        %494 = vmatprep.subr.mxu0 0.0
        %495 = vmatpush1.msra.mxu0 0.0
        %496 = vmatprep.subr.mxu0 0.0
        %497 = vmatpush1.msra.mxu0 0.0
        %498 = vmatprep.mubr.f32.mxu0 %v426
        %499 = vmatmul.mubr.f32.gmra.mrb[0].mxu0 %v343
        %v500 = vpop.f32.mrb[0].mxu0
        %v501 = vadd.f32 0.0, %v500
        %v502 = vpop.f32.mrb[0].mxu0
        %503 = vmatprep.mubr.f32.mxu0 %v429
        %504 = vmatmul.mubr.f32.gmra.mrb[0].mxu0 %v345
        %v505 = vpop.f32.mrb[0].mxu0
        %v506 = vadd.f32 0.0, %v505
        %v507 = vpop.f32.mrb[0].mxu0
        %508 = vmatprep.mubr.f32.mxu0 %v432
        %509 = vmatmul.mubr.f32.gmra.mrb[0].mxu0 %v347
        %v510 = vpop.f32.mrb[0].mxu0
        %v511 = vadd.f32 0.0, %v510
        %v512 = vpop.f32.mrb[0].mxu0
        %513 = vdwg.mxu0
        %514 = vset.pattern.permute.xlu0 2
        %515 = vperm.xlu0 %514, %v174
        %v516 = vpop.permute.xlu0 %515
        %518 = vset.pattern.permute.xlu0 2
        %519 = vperm.xlu0 %518, %v175
        %v520 = vpop.permute.xlu0 %519
        %522 = vset.pattern.permute.xlu0 2
        %523 = vperm.xlu0 %522, %v176
        %v524 = vpop.permute.xlu0 %523
        %v526 = vmul.f32 %v501, %v516
        %v527 = vmul.f32 %v506, %v520
        %v528 = vmul.f32 %v511, %v524
        %529 = vset.pattern.permute.xlu0 3
        %530 = vperm.xlu0 %529, %v174
        %v531 = vpop.permute.xlu0 %530
        %533 = vset.pattern.permute.xlu0 3
        %534 = vperm.xlu0 %533, %v175
        %v535 = vpop.permute.xlu0 %534
        %537 = vset.pattern.permute.xlu0 3
        %538 = vperm.xlu0 %537, %v176
        %v539 = vpop.permute.xlu0 %538
        %v541 = vadd.f32 %v526, %v531
        %v542 = vadd.f32 %v527, %v535
        %v543 = vadd.f32 %v528, %v539
        %v544 = vmax.f32 %v541, 0.0
        %v545 = vmax.f32 %v542, 0.0
        %v546 = vmax.f32 %v543, 0.0
        %v547 = vld [vmem:[#allocation5 + $0x90] sm:$0xff]
        %v548 = vld [vmem:[#allocation5 + $0xa0] sm:$0xff]
        %v549 = vld [vmem:[#allocation5 + $0xb0] sm:$0x7]
        %vm550 = vcmask 154624
        %v552 = vsel %vm550, %v544, 0
        %vm554 = vcmask 1042432
        %v556 = vsel %vm554, %v549, 0
        %558 = vmatprep.subr.mxu0 0.0
        %559 = vmatpush1.msra.mxu0 %v547
        %560 = vmatprep.subr.mxu0 0.0
        %561 = vmatpush1.msra.mxu0 %v548
        %562 = vmatprep.subr.mxu0 0.0
        %563 = vmatpush1.msra.mxu0 %v556
        %564 = vmatprep.subr.mxu0 0.0
        %565 = vmatpush1.msra.mxu0 0.0
        %566 = vmatprep.subr.mxu0 0.0
        %567 = vmatpush1.msra.mxu0 0.0
        %568 = vmatprep.subr.mxu0 0.0
        %569 = vmatpush1.msra.mxu0 0.0
        %570 = vmatprep.subr.mxu0 0.0
        %571 = vmatpush1.msra.mxu0 0.0
        %572 = vmatprep.subr.mxu0 0.0
        %573 = vmatpush1.msra.mxu0 0.0
        %574 = vmatprep.subr.mxu0 0.0
        %575 = vmatpush1.msra.mxu0 0.0
        %576 = vmatprep.subr.mxu0 0.0
        %577 = vmatpush1.msra.mxu0 0.0
        %578 = vmatprep.subr.mxu0 0.0
        %579 = vmatpush1.msra.mxu0 0.0
        %580 = vmatprep.subr.mxu0 0.0
        %581 = vmatpush1.msra.mxu0 0.0
        %582 = vmatprep.subr.mxu0 0.0
        %583 = vmatpush1.msra.mxu0 0.0
        %584 = vmatprep.subr.mxu0 0.0
        %585 = vmatpush1.msra.mxu0 0.0
        %586 = vmatprep.subr.mxu0 0.0
        %587 = vmatpush1.msra.mxu0 0.0
        %588 = vmatprep.subr.mxu0 0.0
        %589 = vmatpush1.msra.mxu0 0.0
        %590 = vmatprep.subr.mxu0 0.0
        %591 = vmatpush1.msra.mxu0 0.0
        %592 = vmatprep.subr.mxu0 0.0
        %593 = vmatpush1.msra.mxu0 0.0
        %594 = vmatprep.subr.mxu0 0.0
        %595 = vmatpush1.msra.mxu0 0.0
        %596 = vmatprep.subr.mxu0 0.0
        %597 = vmatpush1.msra.mxu0 0.0
        %598 = vmatprep.subr.mxu0 0.0
        %599 = vmatpush1.msra.mxu0 0.0
        %600 = vmatprep.subr.mxu0 0.0
        %601 = vmatpush1.msra.mxu0 0.0
        %602 = vmatprep.subr.mxu0 0.0
        %603 = vmatpush1.msra.mxu0 0.0
        %604 = vmatprep.subr.mxu0 0.0
        %605 = vmatpush1.msra.mxu0 0.0
        %606 = vmatprep.subr.mxu0 0.0
        %607 = vmatpush1.msra.mxu0 0.0
        %608 = vmatprep.subr.mxu0 0.0
        %609 = vmatpush1.msra.mxu0 0.0
        %610 = vmatprep.subr.mxu0 0.0
        %611 = vmatpush1.msra.mxu0 0.0
        %612 = vmatprep.subr.mxu0 0.0
        %613 = vmatpush1.msra.mxu0 0.0
        %614 = vmatprep.subr.mxu0 0.0
        %615 = vmatpush1.msra.mxu0 0.0
        %616 = vmatprep.subr.mxu0 0.0
        %617 = vmatpush1.msra.mxu0 0.0
        %618 = vmatprep.subr.mxu0 0.0
        %619 = vmatpush1.msra.mxu0 0.0
        %620 = vmatprep.subr.mxu0 0.0
        %621 = vmatpush1.msra.mxu0 0.0
        %622 = vmatprep.mubr.f32.mxu0 0.0
        %623 = vmatmul.mubr.f32.gmra.mrb[0].mxu0 %v552
        %v624 = vpop.f32.mrb[0].mxu0
        %v625 = vadd.f32 0.0, %v624
        %v626 = vpop.f32.mrb[0].mxu0
        %627 = vdwg.mxu0
        %v628 = vld [vmem:[#allocation5 + $0xb0] sm:$0xf8]
        %v629 = vld [vmem:[#allocation5 + $0xc0] sm:$0xff]
        %v630 = vld [vmem:[#allocation5 + $0xd0] sm:$0x3f]
        %vm634 = vcmask 1044480
        %v635 = vrot.slane %v628, 3
        %v636 = vrot.slane %v629, 3
        %v637 = vsel %vm634, %v635, %v636
        %v638 = vrot.slane %v630, 3
        %v639 = vsel %vm634, %v636, %v638
        %v643 = vsel %vm550, %v545, 0
        %v645 = vsel %vm554, %v638, 0
        %647 = vmatprep.subr.mxu0 0.0
        %648 = vmatpush1.msra.mxu0 %v637
        %649 = vmatprep.subr.mxu0 0.0
        %650 = vmatpush1.msra.mxu0 %v639
        %651 = vmatprep.subr.mxu0 0.0
        %652 = vmatpush1.msra.mxu0 %v645
        %653 = vmatprep.subr.mxu0 0.0
        %654 = vmatpush1.msra.mxu0 0.0
        %655 = vmatprep.subr.mxu0 0.0
        %656 = vmatpush1.msra.mxu0 0.0
        %657 = vmatprep.subr.mxu0 0.0
        %658 = vmatpush1.msra.mxu0 0.0
        %659 = vmatprep.subr.mxu0 0.0
        %660 = vmatpush1.msra.mxu0 0.0
        %661 = vmatprep.subr.mxu0 0.0
        %662 = vmatpush1.msra.mxu0 0.0
        %663 = vmatprep.subr.mxu0 0.0
        %664 = vmatpush1.msra.mxu0 0.0
        %665 = vmatprep.subr.mxu0 0.0
        %666 = vmatpush1.msra.mxu0 0.0
        %667 = vmatprep.subr.mxu0 0.0
        %668 = vmatpush1.msra.mxu0 0.0
        %669 = vmatprep.subr.mxu0 0.0
        %670 = vmatpush1.msra.mxu0 0.0
        %671 = vmatprep.subr.mxu0 0.0
        %672 = vmatpush1.msra.mxu0 0.0
        %673 = vmatprep.subr.mxu0 0.0
        %674 = vmatpush1.msra.mxu0 0.0
        %675 = vmatprep.subr.mxu0 0.0
        %676 = vmatpush1.msra.mxu0 0.0
        %677 = vmatprep.subr.mxu0 0.0
        %678 = vmatpush1.msra.mxu0 0.0
        %679 = vmatprep.subr.mxu0 0.0
        %680 = vmatpush1.msra.mxu0 0.0
        %681 = vmatprep.subr.mxu0 0.0
        %682 = vmatpush1.msra.mxu0 0.0
        %683 = vmatprep.subr.mxu0 0.0
        %684 = vmatpush1.msra.mxu0 0.0
        %685 = vmatprep.subr.mxu0 0.0
        %686 = vmatpush1.msra.mxu0 0.0
        %687 = vmatprep.subr.mxu0 0.0
        %688 = vmatpush1.msra.mxu0 0.0
        %689 = vmatprep.subr.mxu0 0.0
        %690 = vmatpush1.msra.mxu0 0.0
        %691 = vmatprep.subr.mxu0 0.0
        %692 = vmatpush1.msra.mxu0 0.0
        %693 = vmatprep.subr.mxu0 0.0
        %694 = vmatpush1.msra.mxu0 0.0
        %695 = vmatprep.subr.mxu0 0.0
        %696 = vmatpush1.msra.mxu0 0.0
        %697 = vmatprep.subr.mxu0 0.0
        %698 = vmatpush1.msra.mxu0 0.0
        %699 = vmatprep.subr.mxu0 0.0
        %700 = vmatpush1.msra.mxu0 0.0
        %701 = vmatprep.subr.mxu0 0.0
        %702 = vmatpush1.msra.mxu0 0.0
        %703 = vmatprep.subr.mxu0 0.0
        %704 = vmatpush1.msra.mxu0 0.0
        %705 = vmatprep.subr.mxu0 0.0
        %706 = vmatpush1.msra.mxu0 0.0
        %707 = vmatprep.subr.mxu0 0.0
        %708 = vmatpush1.msra.mxu0 0.0
        %709 = vmatprep.subr.mxu0 0.0
        %710 = vmatpush1.msra.mxu0 0.0
        %711 = vmatprep.mubr.f32.mxu0 0.0
        %712 = vmatmul.mubr.f32.gmra.mrb[0].mxu0 %v643
        %v713 = vpop.f32.mrb[0].mxu0
        %v714 = vadd.f32 0.0, %v713
        %v715 = vpop.f32.mrb[0].mxu0
        %716 = vdwg.mxu0
        %v717 = vld [vmem:[#allocation5 + $0xd0] sm:$0xc0]
        %v718 = vld [vmem:[#allocation5 + $0xe0] sm:$0xff]
        %v719 = vld [vmem:[#allocation5 + $0xf0] sm:$0xff]
        %v720 = vld [vmem:[#allocation5 + $0x100] sm:$0x1]
        %vm725 = vcmask 1041408
        %v726 = vrot.slane %v717, 6
        %v727 = vrot.slane %v718, 6
        %v728 = vsel %vm725, %v726, %v727
        %v729 = vrot.slane %v719, 6
        %v730 = vsel %vm725, %v727, %v729
        %v731 = vrot.slane %v720, 6
        %v732 = vsel %vm725, %v729, %v731
        %v736 = vsel %vm550, %v546, 0
        %v738 = vsel %vm554, %v732, 0
        %740 = vmatprep.subr.mxu0 0.0
        %741 = vmatpush1.msra.mxu0 %v728
        %742 = vmatprep.subr.mxu0 0.0
        %743 = vmatpush1.msra.mxu0 %v730
        %744 = vmatprep.subr.mxu0 0.0
        %745 = vmatpush1.msra.mxu0 %v738
        %746 = vmatprep.subr.mxu0 0.0
        %747 = vmatpush1.msra.mxu0 0.0
        %748 = vmatprep.subr.mxu0 0.0
        %749 = vmatpush1.msra.mxu0 0.0
        %750 = vmatprep.subr.mxu0 0.0
        %751 = vmatpush1.msra.mxu0 0.0
        %752 = vmatprep.subr.mxu0 0.0
        %753 = vmatpush1.msra.mxu0 0.0
        %754 = vmatprep.subr.mxu0 0.0
        %755 = vmatpush1.msra.mxu0 0.0
        %756 = vmatprep.subr.mxu0 0.0
        %757 = vmatpush1.msra.mxu0 0.0
        %758 = vmatprep.subr.mxu0 0.0
        %759 = vmatpush1.msra.mxu0 0.0
        %760 = vmatprep.subr.mxu0 0.0
        %761 = vmatpush1.msra.mxu0 0.0
        %762 = vmatprep.subr.mxu0 0.0
        %763 = vmatpush1.msra.mxu0 0.0
        %764 = vmatprep.subr.mxu0 0.0
        %765 = vmatpush1.msra.mxu0 0.0
        %766 = vmatprep.subr.mxu0 0.0
        %767 = vmatpush1.msra.mxu0 0.0
        %768 = vmatprep.subr.mxu0 0.0
        %769 = vmatpush1.msra.mxu0 0.0
        %770 = vmatprep.subr.mxu0 0.0
        %771 = vmatpush1.msra.mxu0 0.0
        %772 = vmatprep.subr.mxu0 0.0
        %773 = vmatpush1.msra.mxu0 0.0
        %774 = vmatprep.subr.mxu0 0.0
        %775 = vmatpush1.msra.mxu0 0.0
        %776 = vmatprep.subr.mxu0 0.0
        %777 = vmatpush1.msra.mxu0 0.0
        %778 = vmatprep.subr.mxu0 0.0
        %779 = vmatpush1.msra.mxu0 0.0
        %780 = vmatprep.subr.mxu0 0.0
        %781 = vmatpush1.msra.mxu0 0.0
        %782 = vmatprep.subr.mxu0 0.0
        %783 = vmatpush1.msra.mxu0 0.0
        %784 = vmatprep.subr.mxu0 0.0
        %785 = vmatpush1.msra.mxu0 0.0
        %786 = vmatprep.subr.mxu0 0.0
        %787 = vmatpush1.msra.mxu0 0.0
        %788 = vmatprep.subr.mxu0 0.0
        %789 = vmatpush1.msra.mxu0 0.0
        %790 = vmatprep.subr.mxu0 0.0
        %791 = vmatpush1.msra.mxu0 0.0
        %792 = vmatprep.subr.mxu0 0.0
        %793 = vmatpush1.msra.mxu0 0.0
        %794 = vmatprep.subr.mxu0 0.0
        %795 = vmatpush1.msra.mxu0 0.0
        %796 = vmatprep.subr.mxu0 0.0
        %797 = vmatpush1.msra.mxu0 0.0
        %798 = vmatprep.subr.mxu0 0.0
        %799 = vmatpush1.msra.mxu0 0.0
        %800 = vmatprep.subr.mxu0 0.0
        %801 = vmatpush1.msra.mxu0 0.0
        %802 = vmatprep.subr.mxu0 0.0
        %803 = vmatpush1.msra.mxu0 0.0
        %804 = vmatprep.mubr.f32.mxu0 0.0
        %805 = vmatmul.mubr.f32.gmra.mrb[0].mxu0 %v736
        %v806 = vpop.f32.mrb[0].mxu0
        %v807 = vadd.f32 0.0, %v806
        %v808 = vpop.f32.mrb[0].mxu0
        %809 = vdwg.mxu0
        %v810 = vld [vmem:[#allocation5 + $0x100] sm:$0xfe]
        %v811 = vld [vmem:[#allocation5 + $0x110] sm:$0x1]
        %v812 = vld [vmem:[#allocation5 + $0x110] sm:$0xfe]
        %v813 = vld [vmem:[#allocation5 + $0x120] sm:$0x1]
        %815 = vset.pattern.permute.xlu0 0
        %816 = vperm.xlu0 %815, %v812
        %v817 = vpop.permute.xlu0 %816
        %819 = vset.pattern.permute.xlu0 0
        %820 = vperm.xlu0 %819, %v813
        %v821 = vpop.permute.xlu0 %820
        %vm824 = vcmask 1046528
        %v825 = vrot.slane %v810, 1
        %v826 = vrot.slane %v811, 1
        %v827 = vsel %vm824, %v825, %v826
        %v828 = vrot.slane %v817, 1
        %v829 = vrot.slane %v821, 1
        %v830 = vsel %vm824, %v828, %v829
        %vm832 = vcmask 195584
        %v833 = vsel %vm832, %v827, 0
        %835 = vmatprep.subr.mxu0 0.0
        %836 = vmatpush1.msra.mxu0 %v625
        %837 = vmatprep.subr.mxu0 0.0
        %838 = vmatpush1.msra.mxu0 %v714
        %839 = vmatprep.subr.mxu0 0.0
        %840 = vmatpush1.msra.mxu0 %v807
        %841 = vmatprep.subr.mxu0 0.0
        %842 = vmatpush1.msra.mxu0 0.0
        %843 = vmatprep.subr.mxu0 0.0
        %844 = vmatpush1.msra.mxu0 0.0
        %845 = vmatprep.subr.mxu0 0.0
        %846 = vmatpush1.msra.mxu0 0.0
        %847 = vmatprep.subr.mxu0 0.0
        %848 = vmatpush1.msra.mxu0 0.0
        %849 = vmatprep.subr.mxu0 0.0
        %850 = vmatpush1.msra.mxu0 0.0
        %851 = vmatprep.subr.mxu0 0.0
        %852 = vmatpush1.msra.mxu0 0.0
        %853 = vmatprep.subr.mxu0 0.0
        %854 = vmatpush1.msra.mxu0 0.0
        %855 = vmatprep.subr.mxu0 0.0
        %856 = vmatpush1.msra.mxu0 0.0
        %857 = vmatprep.subr.mxu0 0.0
        %858 = vmatpush1.msra.mxu0 0.0
        %859 = vmatprep.subr.mxu0 0.0
        %860 = vmatpush1.msra.mxu0 0.0
        %861 = vmatprep.subr.mxu0 0.0
        %862 = vmatpush1.msra.mxu0 0.0
        %863 = vmatprep.subr.mxu0 0.0
        %864 = vmatpush1.msra.mxu0 0.0
        %865 = vmatprep.subr.mxu0 0.0
        %866 = vmatpush1.msra.mxu0 0.0
        %867 = vmatprep.subr.mxu0 0.0
        %868 = vmatpush1.msra.mxu0 0.0
        %869 = vmatprep.subr.mxu0 0.0
        %870 = vmatpush1.msra.mxu0 0.0
        %871 = vmatprep.subr.mxu0 0.0
        %872 = vmatpush1.msra.mxu0 0.0
        %873 = vmatprep.subr.mxu0 0.0
        %874 = vmatpush1.msra.mxu0 0.0
        %875 = vmatprep.subr.mxu0 0.0
        %876 = vmatpush1.msra.mxu0 0.0
        %877 = vmatprep.subr.mxu0 0.0
        %878 = vmatpush1.msra.mxu0 0.0
        %879 = vmatprep.subr.mxu0 0.0
        %880 = vmatpush1.msra.mxu0 0.0
        %881 = vmatprep.subr.mxu0 0.0
        %882 = vmatpush1.msra.mxu0 0.0
        %883 = vmatprep.subr.mxu0 0.0
        %884 = vmatpush1.msra.mxu0 0.0
        %885 = vmatprep.subr.mxu0 0.0
        %886 = vmatpush1.msra.mxu0 0.0
        %887 = vmatprep.subr.mxu0 0.0
        %888 = vmatpush1.msra.mxu0 0.0
        %889 = vmatprep.subr.mxu0 0.0
        %890 = vmatpush1.msra.mxu0 0.0
        %891 = vmatprep.subr.mxu0 0.0
        %892 = vmatpush1.msra.mxu0 0.0
        %893 = vmatprep.subr.mxu0 0.0
        %894 = vmatpush1.msra.mxu0 0.0
        %895 = vmatprep.subr.mxu0 0.0
        %896 = vmatpush1.msra.mxu0 0.0
        %897 = vmatprep.subr.mxu0 0.0
        %898 = vmatpush1.msra.mxu0 0.0
        %899 = vmatprep.mubr.f32.mxu0 0.0
        %900 = vmatmul.mubr.f32.gmra.mrb[0].mxu0 %v833
        %v901 = vpop.f32.mrb[0].mxu0
        %v902 = vadd.f32 %v830, %v901
        %v903 = vpop.f32.mrb[0].mxu0
        %904 = vdwg.mxu0
        %v905 = vld [vmem:[#allocation5 + $0x213] ss:$0 sm:$0xff]
        %v906 = vmul.f32 %v902, %v905
        %v907 = vld [vmem:[#allocation5 + $0x180] sm:$0xfe]
        %v908 = vld [vmem:[#allocation5 + $0x190] sm:$0xff]
        %v909 = vld [vmem:[#allocation5 + $0x1a0] sm:$0xff]
        %v910 = vld [vmem:[#allocation5 + $0x1b0] sm:$0x1]
        %v911 = vld [vmem:[#allocation5 + $0x120] sm:$0xfe]
        %v912 = vld [vmem:[#allocation5 + $0x130] sm:$0xff]
        %v913 = vld [vmem:[#allocation5 + $0x140] sm:$0xff]
        %v914 = vld [vmem:[#allocation5 + $0x150] sm:$0x1]
        %916 = vrot.lane.b32.xlu0 %v906, 3
        %v917 = vpop.permute.xlu0 %916
        %v919 = vsel %vm184, 0.0, %v917
        %vm920 = vcmask 113664
        %v921 = vsel %vm920, %v919, 0.0
        %923 = vrot.lane.b32.xlu0 %v921, 127
        %v924 = vpop.permute.xlu0 %923
        %926 = vrot.lane.b32.xlu0 %v921, 126
        %v927 = vpop.permute.xlu0 %926
        %929 = vrot.lane.b32.xlu0 %v921, 125
        %v930 = vpop.permute.xlu0 %929
        %932 = vrot.lane.b32.xlu0 %v921, 124
        %v933 = vpop.permute.xlu0 %932
        %935 = vrot.lane.b32.xlu0 %v921, 123
        %v936 = vpop.permute.xlu0 %935
        %938 = vrot.lane.b32.xlu0 %v921, 122
        %v939 = vpop.permute.xlu0 %938
        %v945 = vrot.slane %v911, 1
        %v946 = vrot.slane %v912, 1
        %v947 = vsel %vm824, %v945, %v946
        %v948 = vrot.slane %v913, 1
        %v949 = vsel %vm824, %v946, %v948
        %v950 = vrot.slane %v914, 1
        %v951 = vsel %vm824, %v948, %v950
        %vm952 = vcmask 457728
        %v953 = vsel %vm952, %v947, 0
        %v955 = vsel %vm952, %v949, 0
        %v957 = vsel %vm952, %v951, 0
        %959 = vmatprep.subr.mxu0 0.0
        %960 = vmatpush1.msra.mxu0 %v921
        %961 = vmatprep.subr.mxu0 0.0
        %962 = vmatpush1.msra.mxu0 %v924
        %963 = vmatprep.subr.mxu0 0.0
        %964 = vmatpush1.msra.mxu0 %v927
        %965 = vmatprep.subr.mxu0 0.0
        %966 = vmatpush1.msra.mxu0 %v930
        %967 = vmatprep.subr.mxu0 0.0
        %968 = vmatpush1.msra.mxu0 %v933
        %969 = vmatprep.subr.mxu0 0.0
        %970 = vmatpush1.msra.mxu0 %v936
        %971 = vmatprep.subr.mxu0 0.0
        %972 = vmatpush1.msra.mxu0 %v939
        %973 = vmatprep.subr.mxu0 0.0
        %974 = vmatpush1.msra.mxu0 0.0
        %975 = vmatprep.subr.mxu0 0.0
        %976 = vmatpush1.msra.mxu0 0.0
        %977 = vmatprep.subr.mxu0 0.0
        %978 = vmatpush1.msra.mxu0 0.0
        %979 = vmatprep.subr.mxu0 0.0
        %980 = vmatpush1.msra.mxu0 0.0
        %981 = vmatprep.subr.mxu0 0.0
        %982 = vmatpush1.msra.mxu0 0.0
        %983 = vmatprep.subr.mxu0 0.0
        %984 = vmatpush1.msra.mxu0 0.0
        %985 = vmatprep.subr.mxu0 0.0
        %986 = vmatpush1.msra.mxu0 0.0
        %987 = vmatprep.subr.mxu0 0.0
        %988 = vmatpush1.msra.mxu0 0.0
        %989 = vmatprep.subr.mxu0 0.0
        %990 = vmatpush1.msra.mxu0 0.0
        %991 = vmatprep.subr.mxu0 0.0
        %992 = vmatpush1.msra.mxu0 0.0
        %993 = vmatprep.subr.mxu0 0.0
        %994 = vmatpush1.msra.mxu0 0.0
        %995 = vmatprep.subr.mxu0 0.0
        %996 = vmatpush1.msra.mxu0 0.0
        %997 = vmatprep.subr.mxu0 0.0
        %998 = vmatpush1.msra.mxu0 0.0
        %999 = vmatprep.subr.mxu0 0.0
        %1000 = vmatpush1.msra.mxu0 0.0
        %1001 = vmatprep.subr.mxu0 0.0
        %1002 = vmatpush1.msra.mxu0 0.0
        %1003 = vmatprep.subr.mxu0 0.0
        %1004 = vmatpush1.msra.mxu0 0.0
        %1005 = vmatprep.subr.mxu0 0.0
        %1006 = vmatpush1.msra.mxu0 0.0
        %1007 = vmatprep.subr.mxu0 0.0
        %1008 = vmatpush1.msra.mxu0 0.0
        %1009 = vmatprep.subr.mxu0 0.0
        %1010 = vmatpush1.msra.mxu0 0.0
        %1011 = vmatprep.subr.mxu0 0.0
        %1012 = vmatpush1.msra.mxu0 0.0
        %1013 = vmatprep.subr.mxu0 0.0
        %1014 = vmatpush1.msra.mxu0 0.0
        %1015 = vmatprep.subr.mxu0 0.0
        %1016 = vmatpush1.msra.mxu0 0.0
        %1017 = vmatprep.subr.mxu0 0.0
        %1018 = vmatpush1.msra.mxu0 0.0
        %1019 = vmatprep.subr.mxu0 0.0
        %1020 = vmatpush1.msra.mxu0 0.0
        %1021 = vmatprep.subr.mxu0 0.0
        %1022 = vmatpush1.msra.mxu0 0.0
        %1023 = vmatprep.mubr.f32.mxu0 0.0
        %1024 = vmatmul.mubr.f32.gmra.mrb[0].mxu0 %v953
        %v1025 = vpop.f32.mrb[0].mxu0
        %v1026 = vadd.f32 0.0, %v1025
        %v1027 = vpop.f32.mrb[0].mxu0
        %1028 = vmatprep.mubr.f32.mxu0 0.0
        %1029 = vmatmul.mubr.f32.gmra.mrb[0].mxu0 %v955
        %v1030 = vpop.f32.mrb[0].mxu0
        %v1031 = vadd.f32 0.0, %v1030
        %v1032 = vpop.f32.mrb[0].mxu0
        %1033 = vmatprep.mubr.f32.mxu0 0.0
        %1034 = vmatmul.mubr.f32.gmra.mrb[0].mxu0 %v957
        %v1035 = vpop.f32.mrb[0].mxu0
        %v1036 = vadd.f32 0.0, %v1035
        %v1037 = vpop.f32.mrb[0].mxu0
        %1038 = vdwg.mxu0
        %1040 = vset.pattern.permute.xlu0 0
        %1041 = vperm.xlu0 %1040, %v907
        %v1042 = vpop.permute.xlu0 %1041
        %1044 = vset.pattern.permute.xlu0 0
        %1045 = vperm.xlu0 %1044, %v908
        %v1046 = vpop.permute.xlu0 %1045
        %1048 = vset.pattern.permute.xlu0 0
        %1049 = vperm.xlu0 %1048, %v909
        %v1050 = vpop.permute.xlu0 %1049
        %1052 = vset.pattern.permute.xlu0 0
        %1053 = vperm.xlu0 %1052, %v910
        %v1054 = vpop.permute.xlu0 %1053
        %v1055 = vrot.slane %v1042, 1
        %v1056 = vrot.slane %v1046, 1
        %v1057 = vsel %vm824, %v1055, %v1056
        %v1058 = vrot.slane %v1050, 1
        %v1059 = vsel %vm824, %v1056, %v1058
        %v1060 = vrot.slane %v1054, 1
        %v1061 = vsel %vm824, %v1058, %v1060
        %v1065 = vmul.f32 %v1026, %v1057
        %v1066 = vmul.f32 %v1031, %v1059
        %v1067 = vmul.f32 %v1036, %v1061
        %1068 = vset.pattern.permute.xlu0 1
        %1069 = vperm.xlu0 %1068, %v907
        %v1070 = vpop.permute.xlu0 %1069
        %1071 = vset.pattern.permute.xlu0 1
        %1072 = vperm.xlu0 %1071, %v908
        %v1073 = vpop.permute.xlu0 %1072
        %1074 = vset.pattern.permute.xlu0 1
        %1075 = vperm.xlu0 %1074, %v909
        %v1076 = vpop.permute.xlu0 %1075
        %1077 = vset.pattern.permute.xlu0 1
        %1078 = vperm.xlu0 %1077, %v910
        %v1079 = vpop.permute.xlu0 %1078
        %v1080 = vrot.slane %v1070, 1
        %v1081 = vrot.slane %v1073, 1
        %v1082 = vsel %vm824, %v1080, %v1081
        %v1083 = vrot.slane %v1076, 1
        %v1084 = vsel %vm824, %v1081, %v1083
        %v1085 = vrot.slane %v1079, 1
        %v1086 = vsel %vm824, %v1083, %v1085
        %v1090 = vadd.f32 %v1065, %v1082
        %v1091 = vadd.f32 %v1066, %v1084
        %v1092 = vadd.f32 %v1067, %v1086
        %v1093 = vmax.f32 %v1090, 0.0
        %v1094 = vmax.f32 %v1091, 0.0
        %v1095 = vmax.f32 %v1092, 0.0
        %v1096 = vmul.f32 %v1093, %v905
        %v1097 = vmul.f32 %v1094, %v905
        %v1098 = vmul.f32 %v1095, %v905
        %v1099 = vld [vmem:[#allocation5 + $0x150] sm:$0xfe]
        %v1100 = vld [vmem:[#allocation5 + $0x158] sm:$0xfe]
        %v1101 = vld [vmem:[#allocation5 + $0x160] sm:$0xff]
        %v1102 = vld [vmem:[#allocation5 + $0x168] sm:$0xff]
        %v1103 = vld [vmem:[#allocation5 + $0x170] sm:$0xff]
        %v1104 = vld [vmem:[#allocation5 + $0x178] sm:$0xff]
        %v1105 = vld [vmem:[#allocation5 + $0x180] sm:$0x1]
        %v1106 = vld [vmem:[#allocation5 + $0x188] sm:$0x1]
        %1110 = vrot.lane.b32.xlu0 %v1096, 3
        %v1111 = vpop.permute.xlu0 %1110
        %1112 = vrot.lane.b32.xlu0 %v1097, 3
        %v1113 = vpop.permute.xlu0 %1112
        %1114 = vrot.lane.b32.xlu0 %v1098, 3
        %v1115 = vpop.permute.xlu0 %1114
        %v1119 = vsel %vm184, 0.0, %v1111
        %v1120 = vsel %vm184, 0.0, %v1113
        %v1121 = vsel %vm184, 0.0, %v1115
        %v1122 = vsel %vm920, %v1119, 0.0
        %v1123 = vsel %vm920, %v1120, 0.0
        %v1124 = vsel %vm920, %v1121, 0.0
        %1128 = vrot.lane.b32.xlu0 %v1122, 127
        %v1129 = vpop.permute.xlu0 %1128
        %1130 = vrot.lane.b32.xlu0 %v1123, 127
        %v1131 = vpop.permute.xlu0 %1130
        %1132 = vrot.lane.b32.xlu0 %v1124, 127
        %v1133 = vpop.permute.xlu0 %1132
        %1137 = vrot.lane.b32.xlu0 %v1122, 126
        %v1138 = vpop.permute.xlu0 %1137
        %1139 = vrot.lane.b32.xlu0 %v1123, 126
        %v1140 = vpop.permute.xlu0 %1139
        %1141 = vrot.lane.b32.xlu0 %v1124, 126
        %v1142 = vpop.permute.xlu0 %1141
        %1146 = vrot.lane.b32.xlu0 %v1122, 125
        %v1147 = vpop.permute.xlu0 %1146
        %1148 = vrot.lane.b32.xlu0 %v1123, 125
        %v1149 = vpop.permute.xlu0 %1148
        %1150 = vrot.lane.b32.xlu0 %v1124, 125
        %v1151 = vpop.permute.xlu0 %1150
        %1155 = vrot.lane.b32.xlu0 %v1122, 124
        %v1156 = vpop.permute.xlu0 %1155
        %1157 = vrot.lane.b32.xlu0 %v1123, 124
        %v1158 = vpop.permute.xlu0 %1157
        %1159 = vrot.lane.b32.xlu0 %v1124, 124
        %v1160 = vpop.permute.xlu0 %1159
        %1164 = vrot.lane.b32.xlu0 %v1122, 123
        %v1165 = vpop.permute.xlu0 %1164
        %1166 = vrot.lane.b32.xlu0 %v1123, 123
        %v1167 = vpop.permute.xlu0 %1166
        %1168 = vrot.lane.b32.xlu0 %v1124, 123
        %v1169 = vpop.permute.xlu0 %1168
        %1173 = vrot.lane.b32.xlu0 %v1122, 122
        %v1174 = vpop.permute.xlu0 %1173
        %1175 = vrot.lane.b32.xlu0 %v1123, 122
        %v1176 = vpop.permute.xlu0 %1175
        %1177 = vrot.lane.b32.xlu0 %v1124, 122
        %v1178 = vpop.permute.xlu0 %1177
        %v1190 = vrot.slane %v1099, 1
        %v1191 = vrot.slane %v1101, 1
        %v1192 = vsel %vm824, %v1190, %v1191
        %v1193 = vrot.slane %v1100, 1
        %v1194 = vrot.slane %v1102, 1
        %v1195 = vsel %vm824, %v1193, %v1194
        %v1196 = vrot.slane %v1103, 1
        %v1197 = vsel %vm824, %v1191, %v1196
        %v1198 = vrot.slane %v1104, 1
        %v1199 = vsel %vm824, %v1194, %v1198
        %v1200 = vrot.slane %v1105, 1
        %v1201 = vsel %vm824, %v1196, %v1200
        %v1202 = vrot.slane %v1106, 1
        %v1203 = vsel %vm824, %v1198, %v1202
        %v1207 = vsel %vm424, %v1195, 0
        %v1209 = vsel %vm424, %v1199, 0
        %v1211 = vsel %vm424, %v1203, 0
        %1213 = vmatprep.subr.mxu0 0.0
        %1214 = vmatpush1.msra.mxu0 %v1122
        %1215 = vmatprep.subr.mxu0 0.0
        %1216 = vmatpush1.msra.mxu0 %v1123
        %1217 = vmatprep.subr.mxu0 0.0
        %1218 = vmatpush1.msra.mxu0 %v1124
        %1219 = vmatprep.subr.mxu0 0.0
        %1220 = vmatpush1.msra.mxu0 %v1129
        %1221 = vmatprep.subr.mxu0 0.0
        %1222 = vmatpush1.msra.mxu0 %v1131
        %1223 = vmatprep.subr.mxu0 0.0
        %1224 = vmatpush1.msra.mxu0 %v1133
        %1225 = vmatprep.subr.mxu0 0.0
        %1226 = vmatpush1.msra.mxu0 %v1138
        %1227 = vmatprep.subr.mxu0 0.0
        %1228 = vmatpush1.msra.mxu0 %v1140
        %1229 = vmatprep.subr.mxu0 0.0
        %1230 = vmatpush1.msra.mxu0 %v1142
        %1231 = vmatprep.subr.mxu0 0.0
        %1232 = vmatpush1.msra.mxu0 %v1147
        %1233 = vmatprep.subr.mxu0 0.0
        %1234 = vmatpush1.msra.mxu0 %v1149
        %1235 = vmatprep.subr.mxu0 0.0
        %1236 = vmatpush1.msra.mxu0 %v1151
        %1237 = vmatprep.subr.mxu0 0.0
        %1238 = vmatpush1.msra.mxu0 %v1156
        %1239 = vmatprep.subr.mxu0 0.0
        %1240 = vmatpush1.msra.mxu0 %v1158
        %1241 = vmatprep.subr.mxu0 0.0
        %1242 = vmatpush1.msra.mxu0 %v1160
        %1243 = vmatprep.subr.mxu0 0.0
        %1244 = vmatpush1.msra.mxu0 %v1165
        %1245 = vmatprep.subr.mxu0 0.0
        %1246 = vmatpush1.msra.mxu0 %v1167
        %1247 = vmatprep.subr.mxu0 0.0
        %1248 = vmatpush1.msra.mxu0 %v1169
        %1249 = vmatprep.subr.mxu0 0.0
        %1250 = vmatpush1.msra.mxu0 %v1174
        %1251 = vmatprep.subr.mxu0 0.0
        %1252 = vmatpush1.msra.mxu0 %v1176
        %1253 = vmatprep.subr.mxu0 0.0
        %1254 = vmatpush1.msra.mxu0 %v1178
        %1255 = vmatprep.subr.mxu0 0.0
        %1256 = vmatpush1.msra.mxu0 0.0
        %1257 = vmatprep.subr.mxu0 0.0
        %1258 = vmatpush1.msra.mxu0 0.0
        %1259 = vmatprep.subr.mxu0 0.0
        %1260 = vmatpush1.msra.mxu0 0.0
        %1261 = vmatprep.subr.mxu0 0.0
        %1262 = vmatpush1.msra.mxu0 0.0
        %1263 = vmatprep.subr.mxu0 0.0
        %1264 = vmatpush1.msra.mxu0 0.0
        %1265 = vmatprep.subr.mxu0 0.0
        %1266 = vmatpush1.msra.mxu0 0.0
        %1267 = vmatprep.subr.mxu0 0.0
        %1268 = vmatpush1.msra.mxu0 0.0
        %1269 = vmatprep.subr.mxu0 0.0
        %1270 = vmatpush1.msra.mxu0 0.0
        %1271 = vmatprep.subr.mxu0 0.0
        %1272 = vmatpush1.msra.mxu0 0.0
        %1273 = vmatprep.subr.mxu0 0.0
        %1274 = vmatpush1.msra.mxu0 0.0
        %1275 = vmatprep.subr.mxu0 0.0
        %1276 = vmatpush1.msra.mxu0 0.0
        %1277 = vmatprep.mubr.f32.mxu0 %v1207
        %1278 = vmatmul.mubr.f32.gmra.mrb[0].mxu0 %v1192
        %v1279 = vpop.f32.mrb[0].mxu0
        %v1280 = vadd.f32 0.0, %v1279
        %v1281 = vpop.f32.mrb[0].mxu0
        %1282 = vmatprep.mubr.f32.mxu0 %v1209
        %1283 = vmatmul.mubr.f32.gmra.mrb[0].mxu0 %v1197
        %v1284 = vpop.f32.mrb[0].mxu0
        %v1285 = vadd.f32 0.0, %v1284
        %v1286 = vpop.f32.mrb[0].mxu0
        %1287 = vmatprep.mubr.f32.mxu0 %v1211
        %1288 = vmatmul.mubr.f32.gmra.mrb[0].mxu0 %v1201
        %v1289 = vpop.f32.mrb[0].mxu0
        %v1290 = vadd.f32 0.0, %v1289
        %v1291 = vpop.f32.mrb[0].mxu0
        %1292 = vdwg.mxu0
        %1293 = vset.pattern.permute.xlu0 2
        %1294 = vperm.xlu0 %1293, %v907
        %v1295 = vpop.permute.xlu0 %1294
        %1296 = vset.pattern.permute.xlu0 2
        %1297 = vperm.xlu0 %1296, %v908
        %v1298 = vpop.permute.xlu0 %1297
        %1299 = vset.pattern.permute.xlu0 2
        %1300 = vperm.xlu0 %1299, %v909
        %v1301 = vpop.permute.xlu0 %1300
        %1302 = vset.pattern.permute.xlu0 2
        %1303 = vperm.xlu0 %1302, %v910
        %v1304 = vpop.permute.xlu0 %1303
        %v1305 = vrot.slane %v1295, 1
        %v1306 = vrot.slane %v1298, 1
        %v1307 = vsel %vm824, %v1305, %v1306
        %v1308 = vrot.slane %v1301, 1
        %v1309 = vsel %vm824, %v1306, %v1308
        %v1310 = vrot.slane %v1304, 1
        %v1311 = vsel %vm824, %v1308, %v1310
        %v1315 = vmul.f32 %v1280, %v1307
        %v1316 = vmul.f32 %v1285, %v1309
        %v1317 = vmul.f32 %v1290, %v1311
        %1318 = vset.pattern.permute.xlu0 3
        %1319 = vperm.xlu0 %1318, %v907
        %v1320 = vpop.permute.xlu0 %1319
        %1321 = vset.pattern.permute.xlu0 3
        %1322 = vperm.xlu0 %1321, %v908
        %v1323 = vpop.permute.xlu0 %1322
        %1324 = vset.pattern.permute.xlu0 3
        %1325 = vperm.xlu0 %1324, %v909
        %v1326 = vpop.permute.xlu0 %1325
        %1327 = vset.pattern.permute.xlu0 3
        %1328 = vperm.xlu0 %1327, %v910
        %v1329 = vpop.permute.xlu0 %1328
        %v1330 = vrot.slane %v1320, 1
        %v1331 = vrot.slane %v1323, 1
        %v1332 = vsel %vm824, %v1330, %v1331
        %v1333 = vrot.slane %v1326, 1
        %v1334 = vsel %vm824, %v1331, %v1333
        %v1335 = vrot.slane %v1329, 1
        %v1336 = vsel %vm824, %v1333, %v1335
        %v1340 = vadd.f32 %v1315, %v1332
        %v1341 = vadd.f32 %v1316, %v1334
        %v1342 = vadd.f32 %v1317, %v1336
        %v1343 = vmax.f32 %v1340, 0.0
        %v1344 = vmax.f32 %v1341, 0.0
        %v1345 = vmax.f32 %v1342, 0.0
        %v1346 = vld [vmem:[#allocation5 + $0x1b0] sm:$0xfe]
        %v1347 = vld [vmem:[#allocation5 + $0x1c0] sm:$0xf]
        %v1350 = vrot.slane %v1346, 1
        %v1351 = vrot.slane %v1347, 1
        %v1352 = vsel %vm824, %v1350, %v1351
        %vm1354 = vcmask 89088
        %v1356 = vsel %vm1354, %v1343, 0
        %v1358 = vsel %vm554, %v1351, 0
        %1360 = vmatprep.subr.mxu0 0.0
        %1361 = vmatpush1.msra.mxu0 %v1352
        %1362 = vmatprep.subr.mxu0 0.0
        %1363 = vmatpush1.msra.mxu0 %v1358
        %1364 = vmatprep.subr.mxu0 0.0
        %1365 = vmatpush1.msra.mxu0 0.0
        %1366 = vmatprep.subr.mxu0 0.0
        %1367 = vmatpush1.msra.mxu0 0.0
        %1368 = vmatprep.subr.mxu0 0.0
        %1369 = vmatpush1.msra.mxu0 0.0
        %1370 = vmatprep.subr.mxu0 0.0
        %1371 = vmatpush1.msra.mxu0 0.0
        %1372 = vmatprep.subr.mxu0 0.0
        %1373 = vmatpush1.msra.mxu0 0.0
        %1374 = vmatprep.subr.mxu0 0.0
        %1375 = vmatpush1.msra.mxu0 0.0
        %1376 = vmatprep.subr.mxu0 0.0
        %1377 = vmatpush1.msra.mxu0 0.0
        %1378 = vmatprep.subr.mxu0 0.0
        %1379 = vmatpush1.msra.mxu0 0.0
        %1380 = vmatprep.subr.mxu0 0.0
        %1381 = vmatpush1.msra.mxu0 0.0
        %1382 = vmatprep.subr.mxu0 0.0
        %1383 = vmatpush1.msra.mxu0 0.0
        %1384 = vmatprep.subr.mxu0 0.0
        %1385 = vmatpush1.msra.mxu0 0.0
        %1386 = vmatprep.subr.mxu0 0.0
        %1387 = vmatpush1.msra.mxu0 0.0
        %1388 = vmatprep.subr.mxu0 0.0
        %1389 = vmatpush1.msra.mxu0 0.0
        %1390 = vmatprep.subr.mxu0 0.0
        %1391 = vmatpush1.msra.mxu0 0.0
        %1392 = vmatprep.subr.mxu0 0.0
        %1393 = vmatpush1.msra.mxu0 0.0
        %1394 = vmatprep.subr.mxu0 0.0
        %1395 = vmatpush1.msra.mxu0 0.0
        %1396 = vmatprep.subr.mxu0 0.0
        %1397 = vmatpush1.msra.mxu0 0.0
        %1398 = vmatprep.subr.mxu0 0.0
        %1399 = vmatpush1.msra.mxu0 0.0
        %1400 = vmatprep.subr.mxu0 0.0
        %1401 = vmatpush1.msra.mxu0 0.0
        %1402 = vmatprep.subr.mxu0 0.0
        %1403 = vmatpush1.msra.mxu0 0.0
        %1404 = vmatprep.subr.mxu0 0.0
        %1405 = vmatpush1.msra.mxu0 0.0
        %1406 = vmatprep.subr.mxu0 0.0
        %1407 = vmatpush1.msra.mxu0 0.0
        %1408 = vmatprep.subr.mxu0 0.0
        %1409 = vmatpush1.msra.mxu0 0.0
        %1410 = vmatprep.subr.mxu0 0.0
        %1411 = vmatpush1.msra.mxu0 0.0
        %1412 = vmatprep.subr.mxu0 0.0
        %1413 = vmatpush1.msra.mxu0 0.0
        %1414 = vmatprep.subr.mxu0 0.0
        %1415 = vmatpush1.msra.mxu0 0.0
        %1416 = vmatprep.subr.mxu0 0.0
        %1417 = vmatpush1.msra.mxu0 0.0
        %1418 = vmatprep.subr.mxu0 0.0
        %1419 = vmatpush1.msra.mxu0 0.0
        %1420 = vmatprep.subr.mxu0 0.0
        %1421 = vmatpush1.msra.mxu0 0.0
        %1422 = vmatprep.subr.mxu0 0.0
        %1423 = vmatpush1.msra.mxu0 0.0
        %1424 = vmatprep.mubr.f32.mxu0 0.0
        %1425 = vmatmul.mubr.f32.gmra.mrb[0].mxu0 %v1356
        %v1426 = vpop.f32.mrb[0].mxu0
        %v1427 = vadd.f32 0.0, %v1426
        %v1428 = vpop.f32.mrb[0].mxu0
        %1429 = vdwg.mxu0
        %v1430 = vld [vmem:[#allocation5 + $0x1c0] sm:$0xf0]
        %v1431 = vld [vmem:[#allocation5 + $0x1d0] sm:$0x7f]
        %v1434 = vrot.slane %v1430, 4
        %v1435 = vrot.slane %v1431, 4
        %v1436 = vsel %vm207, %v1434, %v1435
        %v1439 = vsel %vm1354, %v1344, 0
        %v1441 = vsel %vm554, %v1435, 0
        %1443 = vmatprep.subr.mxu0 0.0
        %1444 = vmatpush1.msra.mxu0 %v1436
        %1445 = vmatprep.subr.mxu0 0.0
        %1446 = vmatpush1.msra.mxu0 %v1441
        %1447 = vmatprep.subr.mxu0 0.0
        %1448 = vmatpush1.msra.mxu0 0.0
        %1449 = vmatprep.subr.mxu0 0.0
        %1450 = vmatpush1.msra.mxu0 0.0
        %1451 = vmatprep.subr.mxu0 0.0
        %1452 = vmatpush1.msra.mxu0 0.0
        %1453 = vmatprep.subr.mxu0 0.0
        %1454 = vmatpush1.msra.mxu0 0.0
        %1455 = vmatprep.subr.mxu0 0.0
        %1456 = vmatpush1.msra.mxu0 0.0
        %1457 = vmatprep.subr.mxu0 0.0
        %1458 = vmatpush1.msra.mxu0 0.0
        %1459 = vmatprep.subr.mxu0 0.0
        %1460 = vmatpush1.msra.mxu0 0.0
        %1461 = vmatprep.subr.mxu0 0.0
        %1462 = vmatpush1.msra.mxu0 0.0
        %1463 = vmatprep.subr.mxu0 0.0
        %1464 = vmatpush1.msra.mxu0 0.0
        %1465 = vmatprep.subr.mxu0 0.0
        %1466 = vmatpush1.msra.mxu0 0.0
        %1467 = vmatprep.subr.mxu0 0.0
        %1468 = vmatpush1.msra.mxu0 0.0
        %1469 = vmatprep.subr.mxu0 0.0
        %1470 = vmatpush1.msra.mxu0 0.0
        %1471 = vmatprep.subr.mxu0 0.0
        %1472 = vmatpush1.msra.mxu0 0.0
        %1473 = vmatprep.subr.mxu0 0.0
        %1474 = vmatpush1.msra.mxu0 0.0
        %1475 = vmatprep.subr.mxu0 0.0
        %1476 = vmatpush1.msra.mxu0 0.0
        %1477 = vmatprep.subr.mxu0 0.0
        %1478 = vmatpush1.msra.mxu0 0.0
        %1479 = vmatprep.subr.mxu0 0.0
        %1480 = vmatpush1.msra.mxu0 0.0
        %1481 = vmatprep.subr.mxu0 0.0
        %1482 = vmatpush1.msra.mxu0 0.0
        %1483 = vmatprep.subr.mxu0 0.0
        %1484 = vmatpush1.msra.mxu0 0.0
        %1485 = vmatprep.subr.mxu0 0.0
        %1486 = vmatpush1.msra.mxu0 0.0
        %1487 = vmatprep.subr.mxu0 0.0
        %1488 = vmatpush1.msra.mxu0 0.0
        %1489 = vmatprep.subr.mxu0 0.0
        %1490 = vmatpush1.msra.mxu0 0.0
        %1491 = vmatprep.subr.mxu0 0.0
        %1492 = vmatpush1.msra.mxu0 0.0
        %1493 = vmatprep.subr.mxu0 0.0
        %1494 = vmatpush1.msra.mxu0 0.0
        %1495 = vmatprep.subr.mxu0 0.0
        %1496 = vmatpush1.msra.mxu0 0.0
        %1497 = vmatprep.subr.mxu0 0.0
        %1498 = vmatpush1.msra.mxu0 0.0
        %1499 = vmatprep.subr.mxu0 0.0
        %1500 = vmatpush1.msra.mxu0 0.0
        %1501 = vmatprep.subr.mxu0 0.0
        %1502 = vmatpush1.msra.mxu0 0.0
        %1503 = vmatprep.subr.mxu0 0.0
        %1504 = vmatpush1.msra.mxu0 0.0
        %1505 = vmatprep.subr.mxu0 0.0
        %1506 = vmatpush1.msra.mxu0 0.0
        %1507 = vmatprep.mubr.f32.mxu0 0.0
        %1508 = vmatmul.mubr.f32.gmra.mrb[0].mxu0 %v1439
        %v1509 = vpop.f32.mrb[0].mxu0
        %v1510 = vadd.f32 0.0, %v1509
        %v1511 = vpop.f32.mrb[0].mxu0
        %1512 = vdwg.mxu0
        %v1513 = vld [vmem:[#allocation5 + $0x1d0] sm:$0x80]
        %v1514 = vld [vmem:[#allocation5 + $0x1e0] sm:$0xff]
        %v1515 = vld [vmem:[#allocation5 + $0x1f0] sm:$0x3]
        %vm1519 = vcmask 1040384
        %v1520 = vrot.slane %v1513, 7
        %v1521 = vrot.slane %v1514, 7
        %v1522 = vsel %vm1519, %v1520, %v1521
        %v1523 = vrot.slane %v1515, 7
        %v1524 = vsel %vm1519, %v1521, %v1523
        %v1527 = vsel %vm1354, %v1345, 0
        %v1529 = vsel %vm554, %v1524, 0
        %1531 = vmatprep.subr.mxu0 0.0
        %1532 = vmatpush1.msra.mxu0 %v1522
        %1533 = vmatprep.subr.mxu0 0.0
        %1534 = vmatpush1.msra.mxu0 %v1529
        %1535 = vmatprep.subr.mxu0 0.0
        %1536 = vmatpush1.msra.mxu0 0.0
        %1537 = vmatprep.subr.mxu0 0.0
        %1538 = vmatpush1.msra.mxu0 0.0
        %1539 = vmatprep.subr.mxu0 0.0
        %1540 = vmatpush1.msra.mxu0 0.0
        %1541 = vmatprep.subr.mxu0 0.0
        %1542 = vmatpush1.msra.mxu0 0.0
        %1543 = vmatprep.subr.mxu0 0.0
        %1544 = vmatpush1.msra.mxu0 0.0
        %1545 = vmatprep.subr.mxu0 0.0
        %1546 = vmatpush1.msra.mxu0 0.0
        %1547 = vmatprep.subr.mxu0 0.0
        %1548 = vmatpush1.msra.mxu0 0.0
        %1549 = vmatprep.subr.mxu0 0.0
        %1550 = vmatpush1.msra.mxu0 0.0
        %1551 = vmatprep.subr.mxu0 0.0
        %1552 = vmatpush1.msra.mxu0 0.0
        %1553 = vmatprep.subr.mxu0 0.0
        %1554 = vmatpush1.msra.mxu0 0.0
        %1555 = vmatprep.subr.mxu0 0.0
        %1556 = vmatpush1.msra.mxu0 0.0
        %1557 = vmatprep.subr.mxu0 0.0
        %1558 = vmatpush1.msra.mxu0 0.0
        %1559 = vmatprep.subr.mxu0 0.0
        %1560 = vmatpush1.msra.mxu0 0.0
        %1561 = vmatprep.subr.mxu0 0.0
        %1562 = vmatpush1.msra.mxu0 0.0
        %1563 = vmatprep.subr.mxu0 0.0
        %1564 = vmatpush1.msra.mxu0 0.0
        %1565 = vmatprep.subr.mxu0 0.0
        %1566 = vmatpush1.msra.mxu0 0.0
        %1567 = vmatprep.subr.mxu0 0.0
        %1568 = vmatpush1.msra.mxu0 0.0
        %1569 = vmatprep.subr.mxu0 0.0
        %1570 = vmatpush1.msra.mxu0 0.0
        %1571 = vmatprep.subr.mxu0 0.0
        %1572 = vmatpush1.msra.mxu0 0.0
        %1573 = vmatprep.subr.mxu0 0.0
        %1574 = vmatpush1.msra.mxu0 0.0
        %1575 = vmatprep.subr.mxu0 0.0
        %1576 = vmatpush1.msra.mxu0 0.0
        %1577 = vmatprep.subr.mxu0 0.0
        %1578 = vmatpush1.msra.mxu0 0.0
        %1579 = vmatprep.subr.mxu0 0.0
        %1580 = vmatpush1.msra.mxu0 0.0
        %1581 = vmatprep.subr.mxu0 0.0
        %1582 = vmatpush1.msra.mxu0 0.0
        %1583 = vmatprep.subr.mxu0 0.0
        %1584 = vmatpush1.msra.mxu0 0.0
        %1585 = vmatprep.subr.mxu0 0.0
        %1586 = vmatpush1.msra.mxu0 0.0
        %1587 = vmatprep.subr.mxu0 0.0
        %1588 = vmatpush1.msra.mxu0 0.0
        %1589 = vmatprep.subr.mxu0 0.0
        %1590 = vmatpush1.msra.mxu0 0.0
        %1591 = vmatprep.subr.mxu0 0.0
        %1592 = vmatpush1.msra.mxu0 0.0
        %1593 = vmatprep.subr.mxu0 0.0
        %1594 = vmatpush1.msra.mxu0 0.0
        %1595 = vmatprep.mubr.f32.mxu0 0.0
        %1596 = vmatmul.mubr.f32.gmra.mrb[0].mxu0 %v1527
        %v1597 = vpop.f32.mrb[0].mxu0
        %v1598 = vadd.f32 0.0, %v1597
        %v1599 = vpop.f32.mrb[0].mxu0
        %1600 = vdwg.mxu0
        %v1601 = vld [vmem:[#allocation5 + $0x1f0] sm:$0xfc]
        %v1602 = vld [vmem:[#allocation5 + $0x200] sm:$0x3]
        %v1603 = vld [vmem:[#allocation5 + $0x200] sm:$0xfc]
        %v1604 = vld [vmem:[#allocation5 + $0x210] sm:$0x3]
        %1606 = vset.pattern.permute.xlu0 0
        %1607 = vperm.xlu0 %1606, %v1603
        %v1608 = vpop.permute.xlu0 %1607
        %1610 = vset.pattern.permute.xlu0 0
        %1611 = vperm.xlu0 %1610, %v1604
        %v1612 = vpop.permute.xlu0 %1611
        %vm1615 = vcmask 1045504
        %v1616 = vrot.slane %v1601, 2
        %v1617 = vrot.slane %v1602, 2
        %v1618 = vsel %vm1615, %v1616, %v1617
        %v1619 = vrot.slane %v1608, 2
        %v1620 = vrot.slane %v1612, 2
        %v1621 = vsel %vm1615, %v1619, %v1620
        %v1623 = vsel %vm832, %v1618, 0
        %1625 = vmatprep.subr.mxu0 0.0
        %1626 = vmatpush1.msra.mxu0 %v1427
        %1627 = vmatprep.subr.mxu0 0.0
        %1628 = vmatpush1.msra.mxu0 %v1510
        %1629 = vmatprep.subr.mxu0 0.0
        %1630 = vmatpush1.msra.mxu0 %v1598
        %1631 = vmatprep.subr.mxu0 0.0
        %1632 = vmatpush1.msra.mxu0 0.0
        %1633 = vmatprep.subr.mxu0 0.0
        %1634 = vmatpush1.msra.mxu0 0.0
        %1635 = vmatprep.subr.mxu0 0.0
        %1636 = vmatpush1.msra.mxu0 0.0
        %1637 = vmatprep.subr.mxu0 0.0
        %1638 = vmatpush1.msra.mxu0 0.0
        %1639 = vmatprep.subr.mxu0 0.0
        %1640 = vmatpush1.msra.mxu0 0.0
        %1641 = vmatprep.subr.mxu0 0.0
        %1642 = vmatpush1.msra.mxu0 0.0
        %1643 = vmatprep.subr.mxu0 0.0
        %1644 = vmatpush1.msra.mxu0 0.0
        %1645 = vmatprep.subr.mxu0 0.0
        %1646 = vmatpush1.msra.mxu0 0.0
        %1647 = vmatprep.subr.mxu0 0.0
        %1648 = vmatpush1.msra.mxu0 0.0
        %1649 = vmatprep.subr.mxu0 0.0
        %1650 = vmatpush1.msra.mxu0 0.0
        %1651 = vmatprep.subr.mxu0 0.0
        %1652 = vmatpush1.msra.mxu0 0.0
        %1653 = vmatprep.subr.mxu0 0.0
        %1654 = vmatpush1.msra.mxu0 0.0
        %1655 = vmatprep.subr.mxu0 0.0
        %1656 = vmatpush1.msra.mxu0 0.0
        %1657 = vmatprep.subr.mxu0 0.0
        %1658 = vmatpush1.msra.mxu0 0.0
        %1659 = vmatprep.subr.mxu0 0.0
        %1660 = vmatpush1.msra.mxu0 0.0
        %1661 = vmatprep.subr.mxu0 0.0
        %1662 = vmatpush1.msra.mxu0 0.0
        %1663 = vmatprep.subr.mxu0 0.0
        %1664 = vmatpush1.msra.mxu0 0.0
        %1665 = vmatprep.subr.mxu0 0.0
        %1666 = vmatpush1.msra.mxu0 0.0
        %1667 = vmatprep.subr.mxu0 0.0
        %1668 = vmatpush1.msra.mxu0 0.0
        %1669 = vmatprep.subr.mxu0 0.0
        %1670 = vmatpush1.msra.mxu0 0.0
        %1671 = vmatprep.subr.mxu0 0.0
        %1672 = vmatpush1.msra.mxu0 0.0
        %1673 = vmatprep.subr.mxu0 0.0
        %1674 = vmatpush1.msra.mxu0 0.0
        %1675 = vmatprep.subr.mxu0 0.0
        %1676 = vmatpush1.msra.mxu0 0.0
        %1677 = vmatprep.subr.mxu0 0.0
        %1678 = vmatpush1.msra.mxu0 0.0
        %1679 = vmatprep.subr.mxu0 0.0
        %1680 = vmatpush1.msra.mxu0 0.0
        %1681 = vmatprep.subr.mxu0 0.0
        %1682 = vmatpush1.msra.mxu0 0.0
        %1683 = vmatprep.subr.mxu0 0.0
        %1684 = vmatpush1.msra.mxu0 0.0
        %1685 = vmatprep.subr.mxu0 0.0
        %1686 = vmatpush1.msra.mxu0 0.0
        %1687 = vmatprep.subr.mxu0 0.0
        %1688 = vmatpush1.msra.mxu0 0.0
        %1689 = vmatprep.mubr.f32.mxu0 0.0
        %1690 = vmatmul.mubr.f32.gmra.mrb[0].mxu0 %v1623
        %v1691 = vpop.f32.mrb[0].mxu0
        %v1692 = vadd.f32 %v1621, %v1691
        %v1693 = vpop.f32.mrb[0].mxu0
        %1694 = vdwg.mxu0
        %v1695 = vld [vmem:[#allocation5 + $0x214] ss:$0 sm:$0xff]
        %v1696 = vld [vmem:[#allocation5 + $0x215] ss:$0 sm:$0xff]
        %1698 = vset.pattern.permute.xlu0 0
        %1699 = vperm.xlu0 %1698, %v1696
        %v1700 = vpop.permute.xlu0 %1699
        %vm1702 = vcmask 64512
        %v1704 = vsel %vm1702, %v1695, 0
        %1706 = vmatprep.subr.mxu0 0.0
        %1707 = vmatpush1.msra.mxu0 %v1692
        %1708 = vmatprep.subr.mxu0 0.0
        %1709 = vmatpush1.msra.mxu0 0.0
        %1710 = vmatprep.subr.mxu0 0.0
        %1711 = vmatpush1.msra.mxu0 0.0
        %1712 = vmatprep.subr.mxu0 0.0
        %1713 = vmatpush1.msra.mxu0 0.0
        %1714 = vmatprep.subr.mxu0 0.0
        %1715 = vmatpush1.msra.mxu0 0.0
        %1716 = vmatprep.subr.mxu0 0.0
        %1717 = vmatpush1.msra.mxu0 0.0
        %1718 = vmatprep.subr.mxu0 0.0
        %1719 = vmatpush1.msra.mxu0 0.0
        %1720 = vmatprep.subr.mxu0 0.0
        %1721 = vmatpush1.msra.mxu0 0.0
        %1722 = vmatprep.subr.mxu0 0.0
        %1723 = vmatpush1.msra.mxu0 0.0
        %1724 = vmatprep.subr.mxu0 0.0
        %1725 = vmatpush1.msra.mxu0 0.0
        %1726 = vmatprep.subr.mxu0 0.0
        %1727 = vmatpush1.msra.mxu0 0.0
        %1728 = vmatprep.subr.mxu0 0.0
        %1729 = vmatpush1.msra.mxu0 0.0
        %1730 = vmatprep.subr.mxu0 0.0
        %1731 = vmatpush1.msra.mxu0 0.0
        %1732 = vmatprep.subr.mxu0 0.0
        %1733 = vmatpush1.msra.mxu0 0.0
        %1734 = vmatprep.subr.mxu0 0.0
        %1735 = vmatpush1.msra.mxu0 0.0
        %1736 = vmatprep.subr.mxu0 0.0
        %1737 = vmatpush1.msra.mxu0 0.0
        %1738 = vmatprep.subr.mxu0 0.0
        %1739 = vmatpush1.msra.mxu0 0.0
        %1740 = vmatprep.subr.mxu0 0.0
        %1741 = vmatpush1.msra.mxu0 0.0
        %1742 = vmatprep.subr.mxu0 0.0
        %1743 = vmatpush1.msra.mxu0 0.0
        %1744 = vmatprep.subr.mxu0 0.0
        %1745 = vmatpush1.msra.mxu0 0.0
        %1746 = vmatprep.subr.mxu0 0.0
        %1747 = vmatpush1.msra.mxu0 0.0
        %1748 = vmatprep.subr.mxu0 0.0
        %1749 = vmatpush1.msra.mxu0 0.0
        %1750 = vmatprep.subr.mxu0 0.0
        %1751 = vmatpush1.msra.mxu0 0.0
        %1752 = vmatprep.subr.mxu0 0.0
        %1753 = vmatpush1.msra.mxu0 0.0
        %1754 = vmatprep.subr.mxu0 0.0
        %1755 = vmatpush1.msra.mxu0 0.0
        %1756 = vmatprep.subr.mxu0 0.0
        %1757 = vmatpush1.msra.mxu0 0.0
        %1758 = vmatprep.subr.mxu0 0.0
        %1759 = vmatpush1.msra.mxu0 0.0
        %1760 = vmatprep.subr.mxu0 0.0
        %1761 = vmatpush1.msra.mxu0 0.0
        %1762 = vmatprep.subr.mxu0 0.0
        %1763 = vmatpush1.msra.mxu0 0.0
        %1764 = vmatprep.subr.mxu0 0.0
        %1765 = vmatpush1.msra.mxu0 0.0
        %1766 = vmatprep.subr.mxu0 0.0
        %1767 = vmatpush1.msra.mxu0 0.0
        %1768 = vmatprep.subr.mxu0 0.0
        %1769 = vmatpush1.msra.mxu0 0.0
        %1770 = vmatprep.mubr.f32.mxu0 0.0
        %1771 = vmatmul.mubr.f32.gmra.mrb[0].mxu0 %v1704
        %v1772 = vpop.f32.mrb[0].mxu0
        %v1773 = vadd.f32 %v1700, %v1772
        %v1774 = vpop.f32.mrb[0].mxu0
        %1775 = vdwg.mxu0
        %vm1776 = vcmask 24576
        %1777 = vst.msk [vmem:[%s172] sm:$0x1] %vm1776, %v1773
        %s1778 = sand.u32 %s75, 1
        %s1779 = scalar_lea.sflag [#allocation4], %s1778
        %s1780 = sand.u32 %s75, 1
        %s1781 = scalar_lea.vmem [#allocation7], %s1780
        // Predicated region
        $region37: #{tpu_custom_call.1} parent=27 // pred_check
          %p1782 = pneg %p85
        $region38: #{tpu_custom_call.1} parent=27 // pred_check_branch
          %1784 = sbr.rel (%p1782) target = $region40
        $region39: #{tpu_custom_call.1} parent=27 // pred_region
          %s1786 = ssub.s32 16, 16
          %1787 = vsyncadd %s1779, %s1786
          %s1788 = smul.addr %s20, 16
          %s1789 = scalar_lea.hbm %s2, %s1788
          %s1791 = sshll.u32 %s1781, 4
          %s1792 = int_to_ptr.vmem [resolvable:$true] %s1791
          %1794 = dma.vmem_to_hbm [thread:$0]  %s1792, 16, %s1789, %s1779
        $region40: #{tpu_custom_call.1} parent=27 // pred_fallthru
          _
      $region28: #{tpu_custom_call.1} parent=5 // pred_fallthru
        _
      %p1795 = scmp.le.s32.totalorder 2, %s15
      // Predicated region
      $region41: #{tpu_custom_call.1} parent=5 // pred_check
        %p1796 = pneg %p1795
      $region42: #{tpu_custom_call.1} parent=5 // pred_check_branch
        %1798 = sbr.rel (%p1796) target = $region44
      $region43: #{tpu_custom_call.1} parent=5 // pred_region
        %s1799 = ssub.s32 %s15, 2
        // Predicated region
        $region45: #{tpu_custom_call.1} parent=43 // pred_check
          %p1800 = pneg %p91
        $region46: #{tpu_custom_call.1} parent=43 // pred_check_branch
          %1802 = sbr.rel (%p1800) target = $region48
        $region47: #{tpu_custom_call.1} parent=43 // pred_region
          %s1803 = sand.u32 %s76, 1
          %s1804 = scalar_lea.sflag [#allocation4], %s1803
          %s1805 = sand.u32 %s76, 1
          %s1806 = scalar_lea.vmem [#allocation7], %s1805
          %1807 = dma.done %s1804, 16
        $region48: #{tpu_custom_call.1} parent=43 // pred_fallthru
          _
      $region44: #{tpu_custom_call.1} parent=5 // pred_fallthru
        _
    $region6: #{tpu_custom_call.1} parent=1 // loop_footer
      %s19 = sadd.s32 1, %s15
    $region7: #{tpu_custom_call.1} parent=1 // loop_footer_branch
      %14 = sbr.rel target = $region3
    $region8: #{tpu_custom_call.1} parent=1 // loop_exit
      _
    %1808 = vsyncpa [#allocation3], 1
    %s1809 = scalar_lea.sflag [#allocation3], 1
    %1810 = vsyncpa %s1809, 1
    %1811 = vsyncpa [#allocation6], 1
    %1812 = vsyncpa [#allocation4], 1
    %s1813 = scalar_lea.sflag [#allocation4], 1
    %1814 = vsyncpa %s1813, 1

</llo_original>
